<compile_context>
chip_gen: v6e
topology: v6e:2x2x1
jax: 0.10.0
libtpu: 0.0.40
codegen_flags: <defaults>
</compile_context>

<pallas_src>
import math
from functools import partial

import jax
import jax.numpy as jnp
from jax.experimental import pallas as pl
from jax.experimental.pallas import tpu as pltpu


def _hyper_attn_mlp_kernel(x_ref, base_ref, qk_ref, wv_ref, wo_ref, g_ref, b_ref,
                           o_ref, *, heads, head_dim, hidden_dim, batch_block,
                           compute_dtype, approx_recip):
    f32 = jnp.float32
    cdt = compute_dtype
    L = 2 * hidden_dim

    # Batch-invariant operands (constant index maps -> resident for the whole grid step).
    base = base_ref[...]                      # (L, Dx)  f32, = base_weight + to_out bias
    gamma = g_ref[...]                        # (1, Dx)  f32
    beta = b_ref[...]                         # (1, Dx)  f32
    qk = qk_ref[...]                          # (heads*L, Dx) cdt, = (q_h @ Wk_h^T)/sqrt(d)
    wv = wv_ref[...]                          # (Dx, heads*head_dim) cdt
    wo = wo_ref[...]                          # (heads*head_dim, Dx) cdt

    def one_batch(b, carry):
        # ---- LayerNorm of the context (f32 statistics, bounded to one batch) ----
        xb = x_ref[b].astype(f32)                                        # (N, Dx)
        mean = jnp.mean(xb, axis=-1, keepdims=True)
        var = jnp.mean(jnp.square(xb - mean), axis=-1, keepdims=True)
        nb = ((xb - mean) * jax.lax.rsqrt(var + 1e-5) * gamma + beta).astype(cdt)

        # ---- all-head attention scores in ONE K=Dx matmul ----
        s = jax.lax.dot_general(qk, nb, (((1,), (1,)), ((), ())),
                                preferred_element_type=f32)               # (heads*L, N)
        s = s - jnp.max(s, axis=-1, keepdims=True)
        p = jnp.exp(s)
        denom = jnp.sum(p, axis=-1, keepdims=True)
        if approx_recip:
            p = p * pl.reciprocal(denom, approx=True)                     # EUP slot
        else:
            p = p / denom
        p = p.astype(cdt)

        # ---- lane-dense V projection (one matmul, produced directly in compute dtype) ----
        v_all = jnp.dot(nb, wv, preferred_element_type=cdt)               # (N, heads*d)

        # ---- per-head attend (inherently head_dim-wide), then ONE K=heads*d out-proj ----
        o_parts = []
        for h in range(heads):                                            # short inner loop
            ph = p[h * L:(h + 1) * L, :]                                  # (L, N)
            vh = v_all[:, h * head_dim:(h + 1) * head_dim]                # (N, d)
            o_parts.append(jnp.dot(ph, vh, preferred_element_type=f32))   # (L, d)
        o_flat = jnp.concatenate(o_parts, axis=-1).astype(cdt)            # (L, heads*d)
        attn = jnp.dot(o_flat, wo, preferred_element_type=f32)            # (L, Dx)

        # ---- residual with hoisted base (+ to_out bias), chunk into generated MLP ----
        layer = base + attn                                               # (L, Dx) f32
        up = layer[:hidden_dim, :].astype(cdt)                            # (H, Dx)
        down = layer[hidden_dim:, :].astype(cdt)                          # (H, Dx)

        xc = xb.astype(cdt)
        h1 = jax.lax.dot_general(xc, up, (((1,), (1,)), ((), ())),
                                 preferred_element_type=f32)              # (N, H)
        # exact (erf-based) GELU to match torch.nn.GELU()
        h1 = 0.5 * h1 * (1.0 + jax.lax.erf(h1 * (1.0 / math.sqrt(2.0))))
        out = jnp.dot(h1.astype(cdt), down, preferred_element_type=f32)   # (N, Dx)

        o_ref[b] = out.astype(o_ref.dtype)
        return carry

    if batch_block == 1:
        one_batch(0, 0)
    else:
        jax.lax.fori_loop(0, batch_block, one_batch, 0,
                          unroll=(batch_block <= 4))


def hyper_attention_mlp(x, params, *, heads, head_dim, hidden_dim,
                        batch_block=None, compute_dtype=jnp.bfloat16,
                        approx_softmax_recip=False):
    B, N, Dx = x.shape
    hd = heads * head_dim
    L = 2 * hidden_dim
    f32 = jnp.float32
    cdt = jnp.dtype(compute_dtype)
    scale = 1.0 / math.sqrt(head_dim)

    # ---- batch-invariant precompute & layout prep (plain XLA, hoisted out of the kernel) ----
    bw = params["base_weight"].astype(f32)                       # (L, Dx)
    wq = params["wq"].astype(f32)                                # (Dx, hd)
    wkv = params["wkv"].astype(f32)                              # (Dx, 2*hd)
    wo = params["wo"].astype(f32)                                # (hd, Dx)
    bo = params["bo"].reshape(1, Dx).astype(f32)
    ln_g = params["ln_g"].reshape(1, Dx).astype(f32)
    ln_b = params["ln_b"].reshape(1, Dx).astype(f32)

    q = bw @ wq                                                  # q_proj(base_weight), (L, hd)
    q3 = q.reshape(L, heads, head_dim).transpose(1, 0, 2)        # (h, L, d)
    wk3 = wkv[:, :hd].reshape(Dx, heads, head_dim).transpose(1, 0, 2)   # (h, Dx, d)
    # Fold the K projection and 1/sqrt(d) into the batch-invariant query side so the kernel
    # computes all heads' scores with a single K=Dx matmul against normed(x)^T.
    qk = jnp.einsum('hld,hxd->hlx', q3, wk3,
                    precision=jax.lax.Precision.HIGHEST) * scale         # (h, L, Dx)
    qk_flat = qk.reshape(heads * L, Dx).astype(cdt)
    wv_c = wkv[:, hd:].astype(cdt)                               # (Dx, hd)
    wo_c = wo.astype(cdt)                                        # (hd, Dx)
    base = bw + bo                                               # residual + to_out bias, (L, Dx)

    weight_ops = (base, qk_flat, wv_c, wo_c, ln_g, ln_b)
    weight_bytes = sum(int(a.size) * a.dtype.itemsize for a in weight_ops)
    xblock_bytes = N * Dx * x.dtype.itemsize                     # one batch of x (== out size)

    # ---- batch_block: VMEM budget + >= min(B, 8) grid steps (pipelining / v7x megacore) ----
    if batch_block is None:
        target_steps = min(B, 8)
        bt_steps = max(1, B // target_steps)
        vmem_budget = 24 * 1024 * 1024
        bt_vmem = max(1, (vmem_budget - 2 * weight_bytes) // (4 * xblock_bytes))
        batch_block = int(max(1, min(bt_steps, bt_vmem)))
    batch_block = int(min(batch_block, B))
    while B % batch_block:        # largest divisor of B not exceeding the target (may reach 1)
        batch_block -= 1
    bt = batch_block
    grid = (B // bt,)

    kernel = partial(_hyper_attn_mlp_kernel, heads=heads, head_dim=head_dim,
                     hidden_dim=hidden_dim, batch_block=bt, compute_dtype=cdt,
                     approx_recip=bool(approx_softmax_recip))

    def full(shape):
        return pl.BlockSpec(shape, lambda i, _n=len(shape): (0,) * _n)

    # Explicit scoped-VMEM limit derived from the actual block / weight footprints
    # (kept within v7x's 64 MiB physical VMEM).
    vmem_est = 4 * bt * xblock_bytes + 2 * weight_bytes
    vmem_limit = int(min(64 * 1024 * 1024, max(16 * 1024 * 1024, 2 * vmem_est)))

    # Advisory cost estimate (weights use constant index maps -> counted once).
    flops = B * (2 * heads * L * Dx * N            # fused all-head scores
                 + 2 * N * Dx * hd                 # V projection
                 + 2 * heads * L * N * head_dim    # attend
                 + 2 * L * hd * Dx                 # output projection
                 + 4 * N * hidden_dim * Dx)        # generated MLP (up & down)
    transcendentals = B * (heads * L * N + N * hidden_dim)
    bytes_accessed = 2 * int(x.size) * x.dtype.itemsize + weight_bytes

    return pl.pallas_call(
        kernel,
        out_shape=jax.ShapeDtypeStruct((B, N, Dx), x.dtype),
        grid=grid,
        in_specs=[
            pl.BlockSpec((bt, N, Dx), lambda i: (i, 0, 0)),   # x (context == x)
            full((L, Dx)),              # base_weight + to_out bias
            full((heads * L, Dx)),      # fused, pre-scaled per-head q @ Wk^T
            full((Dx, hd)),             # Wv (all heads, lane-dense)
            full((hd, Dx)),             # Wo
            full((1, Dx)),              # LayerNorm gamma
            full((1, Dx)),              # LayerNorm beta
        ],
        out_specs=pl.BlockSpec((bt, N, Dx), lambda i: (i, 0, 0)),
        compiler_params=pltpu.CompilerParams(
            dimension_semantics=("parallel",),
            vmem_limit_bytes=vmem_limit),
        cost_estimate=pl.CostEstimate(flops=flops, transcendentals=transcendentals,
                                      bytes_accessed=bytes_accessed),
    )(x, base, qk_flat, wv_c, wo_c, ln_g, ln_b)


def reference(x, params, heads, head_dim, hidden_dim):
    """Pure-JAX mirror of the PyTorch forward (for correctness checking)."""
    B, N, Dx = x.shape
    bw = params["base_weight"]                       # (L, Dx)
    L = bw.shape[0]
    hd = heads * head_dim
    q = bw @ params["wq"]                            # (L, hd)
    mean = x.mean(-1, keepdims=True)
    var = ((x - mean) ** 2).mean(-1, keepdims=True)
    normed = (x - mean) / jnp.sqrt(var + 1e-5) * params["ln_g"] + params["ln_b"]
    kv = normed @ params["wkv"]                      # (B, N, 2hd)
    k, v = kv[..., :hd], kv[..., hd:]
    qh = q.reshape(L, heads, head_dim).transpose(1, 0, 2)          # (h, L, d)
    kh = k.reshape(B, N, heads, head_dim).transpose(0, 2, 1, 3)    # (B, h, N, d)
    vh = v.reshape(B, N, heads, head_dim).transpose(0, 2, 1, 3)    # (B, h, N, d)
    s = jnp.einsum('hld,bhnd->bhln', qh, kh) / math.sqrt(head_dim)
    p = jax.nn.softmax(s, axis=-1)
    a = jnp.einsum('bhln,bhnd->bhld', p, vh)
    a = a.transpose(0, 2, 1, 3).reshape(B, L, hd)
    attn_out = a @ params["wo"] + params["bo"]
    layer = bw[None] + attn_out
    up, down = layer[:, :hidden_dim], layer[:, hidden_dim:]
    h1 = jnp.einsum('bnd,bld->bnl', x, up)
    h1 = 0.5 * h1 * (1.0 + jax.lax.erf(h1 / math.sqrt(2.0)))
    return jnp.einsum('bnl,bld->bnd', h1, down)


if __name__ == "__main__":
    key = jax.random.PRNGKey(0)
    B, N = 4, 8
    x_dim, hidden_dim, hidden_attn_dim, heads = 32, 16, 64, 8
    head_dim = hidden_attn_dim // heads
    L = 2 * hidden_dim

    ks = jax.random.split(key, 8)

    def u(k, shape, fan_in):
        bound = 1.0 / math.sqrt(fan_in)
        return jax.random.uniform(k, shape, jnp.float32, -bound, bound)

    # base_down: (hidden, x_dim); base_up: (x_dim, hidden)  (kaiming-style uniform, deterministic)
    base_down = u(ks[0], (hidden_dim, x_dim), x_dim)
    base_up = u(ks[1], (x_dim, hidden_dim), x_dim)
    base_weight = jnp.concatenate([base_down, base_up.T], axis=0)   # (L, x_dim)

    params = {
        "base_weight": base_weight,
        "wq": u(ks[2], (x_dim, hidden_attn_dim), x_dim),            # q_proj (no bias)
        "wkv": u(ks[3], (x_dim, 2 * hidden_attn_dim), x_dim),       # kv_proj (no bias)
        "ln_g": jnp.ones((1, x_dim), jnp.float32),                  # LayerNorm weight
        "ln_b": jnp.zeros((1, x_dim), jnp.float32),                 # LayerNorm bias
        "wo": u(ks[4], (hidden_attn_dim, x_dim), hidden_attn_dim),  # to_out weight
        "bo": u(ks[5], (1, x_dim), hidden_attn_dim),                # to_out bias
    }
    x = jax.random.normal(ks[6], (B, N, x_dim), jnp.float32)

    ref = reference(x, params, heads, head_dim, hidden_dim)

    # f32 compute path, auto batch_block (-> 1 batch per grid step): tight algorithmic check.
    out_f32 = hyper_attention_mlp(x, params, heads=heads, head_dim=head_dim,
                                  hidden_dim=hidden_dim, compute_dtype=jnp.float32)
    out_f32 = jax.block_until_ready(out_f32)
    assert out_f32.shape == (B, N, x_dim)
    assert jnp.allclose(out_f32, ref, atol=5e-4, rtol=5e-4), \
        f"f32 max abs err {float(jnp.max(jnp.abs(out_f32 - ref)))}"

    # bf16 MXU path, 2 batches per grid step (exercises the fori_loop path) + approx softmax.
    out_bf16 = hyper_attention_mlp(x, params, heads=heads, head_dim=head_dim,
                                   hidden_dim=hidden_dim, batch_block=2,
                                   compute_dtype=jnp.bfloat16, approx_softmax_recip=True)
    out_bf16 = jax.block_until_ready(out_bf16)
    assert jnp.allclose(out_bf16, ref, atol=4e-2, rtol=4e-2), \
        f"bf16 max abs err {float(jnp.max(jnp.abs(out_bf16 - ref)))}"

    print("KERNEL_OK")
</pallas_src>

<mosaic_0001>
module attributes {stable_mosaic.version = 11 : i64} {
  func.func @_hyper_attn_mlp_kernel(%arg0: i32, %arg1: memref<1x8x32xf32, #tpu.memory_space<vmem>>, %arg2: memref<32x32xf32, #tpu.memory_space<vmem>>, %arg3: memref<256x32xf32, #tpu.memory_space<vmem>>, %arg4: memref<32x64xf32, #tpu.memory_space<vmem>>, %arg5: memref<64x32xf32, #tpu.memory_space<vmem>>, %arg6: memref<1x32xf32, #tpu.memory_space<vmem>>, %arg7: memref<1x32xf32, #tpu.memory_space<vmem>>, %arg8: memref<1x8x32xf32, #tpu.memory_space<vmem>>) attributes {dimension_semantics = [#tpu.dimension_semantics<parallel>], iteration_bounds = array<i64: 4>, scalar_prefetch = 0 : i64, scratch_operands = 0 : i64, tpu.core_type = #tpu.core_type<tc>, window_params = [{transform_indices = @transform_0, window_bounds = array<i64: 1, 8, 32>}, {pipeline_mode = #tpu.pipeline_mode<synchronous>, transform_indices = @transform_1, window_bounds = array<i64: 32, 32>}, {pipeline_mode = #tpu.pipeline_mode<synchronous>, transform_indices = @transform_2, window_bounds = array<i64: 256, 32>}, {pipeline_mode = #tpu.pipeline_mode<synchronous>, transform_indices = @transform_3, window_bounds = array<i64: 32, 64>}, {pipeline_mode = #tpu.pipeline_mode<synchronous>, transform_indices = @transform_4, window_bounds = array<i64: 64, 32>}, {pipeline_mode = #tpu.pipeline_mode<synchronous>, transform_indices = @transform_5, window_bounds = array<i64: 1, 32>}, {pipeline_mode = #tpu.pipeline_mode<synchronous>, transform_indices = @transform_6, window_bounds = array<i64: 1, 32>}, {transform_indices = @transform_7, window_bounds = array<i64: 1, 8, 32>}]} {
    %c0 = arith.constant 0 : index
    %c0_0 = arith.constant 0 : index
    %0 = vector.load %arg2[%c0, %c0_0] : memref<32x32xf32, #tpu.memory_space<vmem>>, vector<32x32xf32>
    %c0_1 = arith.constant 0 : index
    %c0_2 = arith.constant 0 : index
    %1 = vector.load %arg6[%c0_1, %c0_2] : memref<1x32xf32, #tpu.memory_space<vmem>>, vector<1x32xf32>
    %c0_3 = arith.constant 0 : index
    %c0_4 = arith.constant 0 : index
    %2 = vector.load %arg7[%c0_3, %c0_4] : memref<1x32xf32, #tpu.memory_space<vmem>>, vector<1x32xf32>
    %c0_5 = arith.constant 0 : index
    %c0_6 = arith.constant 0 : index
    %3 = vector.load %arg3[%c0_5, %c0_6] : memref<256x32xf32, #tpu.memory_space<vmem>>, vector<256x32xf32>
    %c0_7 = arith.constant 0 : index
    %c0_8 = arith.constant 0 : index
    %4 = vector.load %arg4[%c0_7, %c0_8] : memref<32x64xf32, #tpu.memory_space<vmem>>, vector<32x64xf32>
    %c0_9 = arith.constant 0 : index
    %c0_10 = arith.constant 0 : index
    %5 = vector.load %arg5[%c0_9, %c0_10] : memref<64x32xf32, #tpu.memory_space<vmem>>, vector<64x32xf32>
    %c0_11 = arith.constant 0 : index
    %c0_12 = arith.constant 0 : index
    %c0_13 = arith.constant 0 : index
    %6 = vector.load %arg1[%c0_11, %c0_12, %c0_13] : memref<1x8x32xf32, #tpu.memory_space<vmem>>, vector<1x8x32xf32>
    %7 = vector.shape_cast %6 : vector<1x8x32xf32> to vector<8x32xf32>
    %cst = arith.constant dense<0.000000e+00> : vector<8xf32>
    %8 = vector.multi_reduction <add>, %7, %cst [1] : vector<8x32xf32> to vector<8xf32>
    %9 = vector.shape_cast %8 : vector<8xf32> to vector<8x1xf32>
    %cst_14 = arith.constant 3.200000e+01 : f32
    %10 = vector.broadcast %cst_14 : f32 to vector<8x1xf32>
    %11 = arith.divf %9, %10 : vector<8x1xf32>
    %12 = vector.broadcast %11 : vector<8x1xf32> to vector<8x32xf32>
    %13 = arith.subf %7, %12 : vector<8x32xf32>
    %14 = arith.mulf %13, %13 : vector<8x32xf32>
    %cst_15 = arith.constant dense<0.000000e+00> : vector<8xf32>
    %15 = vector.multi_reduction <add>, %14, %cst_15 [1] : vector<8x32xf32> to vector<8xf32>
    %16 = vector.shape_cast %15 : vector<8xf32> to vector<8x1xf32>
    %cst_16 = arith.constant 3.200000e+01 : f32
    %17 = vector.broadcast %cst_16 : f32 to vector<8x1xf32>
    %18 = arith.divf %16, %17 : vector<8x1xf32>
    %19 = vector.broadcast %11 : vector<8x1xf32> to vector<8x32xf32>
    %20 = arith.subf %7, %19 : vector<8x32xf32>
    %cst_17 = arith.constant 9.99999974E-6 : f32
    %21 = vector.broadcast %cst_17 : f32 to vector<8x1xf32>
    %22 = arith.addf %18, %21 : vector<8x1xf32>
    %23 = math.rsqrt %22 : vector<8x1xf32>
    %24 = vector.broadcast %23 : vector<8x1xf32> to vector<8x32xf32>
    %25 = arith.mulf %20, %24 : vector<8x32xf32>
    %26 = vector.broadcast %1 : vector<1x32xf32> to vector<8x32xf32>
    %27 = arith.mulf %25, %26 : vector<8x32xf32>
    %28 = vector.broadcast %2 : vector<1x32xf32> to vector<8x32xf32>
    %29 = arith.addf %27, %28 : vector<8x32xf32>
    %cst_18 = arith.constant dense<0.000000e+00> : vector<256x8xf32>
    %30 = tpu.matmul %3, %29, %cst_18 {dimension_numbers = #tpu.dot_dimension_numbers<[1], [1], [0], [0], [0, 0, 1, 0], [], []>} : vector<256x32xf32>, vector<8x32xf32>, vector<256x8xf32> -> vector<256x8xf32>
    %cst_19 = arith.constant dense<0xFF800000> : vector<256xf32>
    %31 = vector.multi_reduction <maximumf>, %30, %cst_19 [1] : vector<256x8xf32> to vector<256xf32>
    %32 = vector.shape_cast %31 : vector<256xf32> to vector<256x1xf32>
    %33 = vector.broadcast %32 : vector<256x1xf32> to vector<256x8xf32>
    %34 = arith.subf %30, %33 : vector<256x8xf32>
    %35 = math.exp %34 : vector<256x8xf32>
    %cst_20 = arith.constant dense<0.000000e+00> : vector<256xf32>
    %36 = vector.multi_reduction <add>, %35, %cst_20 [1] : vector<256x8xf32> to vector<256xf32>
    %37 = vector.shape_cast %36 : vector<256xf32> to vector<256x1xf32>
    %38 = vector.broadcast %37 : vector<256x1xf32> to vector<256x8xf32>
    %39 = arith.divf %35, %38 : vector<256x8xf32>
    %cst_21 = arith.constant dense<0.000000e+00> : vector<8x64xf32>
    %40 = tpu.matmul %29, %4, %cst_21 {dimension_numbers = #tpu.dot_dimension_numbers<[1], [0], [0], [1], [0, 0, 1, 1], [], []>} : vector<8x32xf32>, vector<32x64xf32>, vector<8x64xf32> -> vector<8x64xf32>
    %41 = vector.extract_strided_slice %39 {offsets = [0, 0], sizes = [32, 8], strides = [1, 1]} : vector<256x8xf32> to vector<32x8xf32>
    %42 = vector.extract_strided_slice %40 {offsets = [0, 0], sizes = [8, 8], strides = [1, 1]} : vector<8x64xf32> to vector<8x8xf32>
    %cst_22 = arith.constant dense<0.000000e+00> : vector<32x8xf32>
    %43 = tpu.matmul %41, %42, %cst_22 {dimension_numbers = #tpu.dot_dimension_numbers<[1], [0], [0], [1], [0, 0, 1, 1], [], []>} : vector<32x8xf32>, vector<8x8xf32>, vector<32x8xf32> -> vector<32x8xf32>
    %44 = vector.extract_strided_slice %39 {offsets = [32, 0], sizes = [32, 8], strides = [1, 1]} : vector<256x8xf32> to vector<32x8xf32>
    %45 = vector.extract_strided_slice %40 {offsets = [0, 8], sizes = [8, 8], strides = [1, 1]} : vector<8x64xf32> to vector<8x8xf32>
    %cst_23 = arith.constant dense<0.000000e+00> : vector<32x8xf32>
    %46 = tpu.matmul %44, %45, %cst_23 {dimension_numbers = #tpu.dot_dimension_numbers<[1], [0], [0], [1], [0, 0, 1, 1], [], []>} : vector<32x8xf32>, vector<8x8xf32>, vector<32x8xf32> -> vector<32x8xf32>
    %47 = vector.extract_strided_slice %39 {offsets = [64, 0], sizes = [32, 8], strides = [1, 1]} : vector<256x8xf32> to vector<32x8xf32>
    %48 = vector.extract_strided_slice %40 {offsets = [0, 16], sizes = [8, 8], strides = [1, 1]} : vector<8x64xf32> to vector<8x8xf32>
    %cst_24 = arith.constant dense<0.000000e+00> : vector<32x8xf32>
    %49 = tpu.matmul %47, %48, %cst_24 {dimension_numbers = #tpu.dot_dimension_numbers<[1], [0], [0], [1], [0, 0, 1, 1], [], []>} : vector<32x8xf32>, vector<8x8xf32>, vector<32x8xf32> -> vector<32x8xf32>
    %50 = vector.extract_strided_slice %39 {offsets = [96, 0], sizes = [32, 8], strides = [1, 1]} : vector<256x8xf32> to vector<32x8xf32>
    %51 = vector.extract_strided_slice %40 {offsets = [0, 24], sizes = [8, 8], strides = [1, 1]} : vector<8x64xf32> to vector<8x8xf32>
    %cst_25 = arith.constant dense<0.000000e+00> : vector<32x8xf32>
    %52 = tpu.matmul %50, %51, %cst_25 {dimension_numbers = #tpu.dot_dimension_numbers<[1], [0], [0], [1], [0, 0, 1, 1], [], []>} : vector<32x8xf32>, vector<8x8xf32>, vector<32x8xf32> -> vector<32x8xf32>
    %53 = vector.extract_strided_slice %39 {offsets = [128, 0], sizes = [32, 8], strides = [1, 1]} : vector<256x8xf32> to vector<32x8xf32>
    %54 = vector.extract_strided_slice %40 {offsets = [0, 32], sizes = [8, 8], strides = [1, 1]} : vector<8x64xf32> to vector<8x8xf32>
    %cst_26 = arith.constant dense<0.000000e+00> : vector<32x8xf32>
    %55 = tpu.matmul %53, %54, %cst_26 {dimension_numbers = #tpu.dot_dimension_numbers<[1], [0], [0], [1], [0, 0, 1, 1], [], []>} : vector<32x8xf32>, vector<8x8xf32>, vector<32x8xf32> -> vector<32x8xf32>
    %56 = vector.extract_strided_slice %39 {offsets = [160, 0], sizes = [32, 8], strides = [1, 1]} : vector<256x8xf32> to vector<32x8xf32>
    %57 = vector.extract_strided_slice %40 {offsets = [0, 40], sizes = [8, 8], strides = [1, 1]} : vector<8x64xf32> to vector<8x8xf32>
    %cst_27 = arith.constant dense<0.000000e+00> : vector<32x8xf32>
    %58 = tpu.matmul %56, %57, %cst_27 {dimension_numbers = #tpu.dot_dimension_numbers<[1], [0], [0], [1], [0, 0, 1, 1], [], []>} : vector<32x8xf32>, vector<8x8xf32>, vector<32x8xf32> -> vector<32x8xf32>
    %59 = vector.extract_strided_slice %39 {offsets = [192, 0], sizes = [32, 8], strides = [1, 1]} : vector<256x8xf32> to vector<32x8xf32>
    %60 = vector.extract_strided_slice %40 {offsets = [0, 48], sizes = [8, 8], strides = [1, 1]} : vector<8x64xf32> to vector<8x8xf32>
    %cst_28 = arith.constant dense<0.000000e+00> : vector<32x8xf32>
    %61 = tpu.matmul %59, %60, %cst_28 {dimension_numbers = #tpu.dot_dimension_numbers<[1], [0], [0], [1], [0, 0, 1, 1], [], []>} : vector<32x8xf32>, vector<8x8xf32>, vector<32x8xf32> -> vector<32x8xf32>
    %62 = vector.extract_strided_slice %39 {offsets = [224, 0], sizes = [32, 8], strides = [1, 1]} : vector<256x8xf32> to vector<32x8xf32>
    %63 = vector.extract_strided_slice %40 {offsets = [0, 56], sizes = [8, 8], strides = [1, 1]} : vector<8x64xf32> to vector<8x8xf32>
    %cst_29 = arith.constant dense<0.000000e+00> : vector<32x8xf32>
    %64 = tpu.matmul %62, %63, %cst_29 {dimension_numbers = #tpu.dot_dimension_numbers<[1], [0], [0], [1], [0, 0, 1, 1], [], []>} : vector<32x8xf32>, vector<8x8xf32>, vector<32x8xf32> -> vector<32x8xf32>
    %65 = tpu.concatenate %43, %46, %49, %52, %55, %58, %61, %64 in 1 : vector<32x8xf32>, vector<32x8xf32>, vector<32x8xf32>, vector<32x8xf32>, vector<32x8xf32>, vector<32x8xf32>, vector<32x8xf32>, vector<32x8xf32> -> vector<32x64xf32>
    %cst_30 = arith.constant dense<0.000000e+00> : vector<32x32xf32>
    %66 = tpu.matmul %65, %5, %cst_30 {dimension_numbers = #tpu.dot_dimension_numbers<[1], [0], [0], [1], [0, 0, 1, 1], [], []>} : vector<32x64xf32>, vector<64x32xf32>, vector<32x32xf32> -> vector<32x32xf32>
    %67 = arith.addf %0, %66 : vector<32x32xf32>
    %68 = vector.extract_strided_slice %67 {offsets = [0, 0], sizes = [16, 32], strides = [1, 1]} : vector<32x32xf32> to vector<16x32xf32>
    %69 = vector.extract_strided_slice %67 {offsets = [16, 0], sizes = [16, 32], strides = [1, 1]} : vector<32x32xf32> to vector<16x32xf32>
    %cst_31 = arith.constant dense<0.000000e+00> : vector<8x16xf32>
    %70 = tpu.matmul %7, %68, %cst_31 {dimension_numbers = #tpu.dot_dimension_numbers<[1], [1], [0], [0], [0, 0, 1, 0], [], []>} : vector<8x32xf32>, vector<16x32xf32>, vector<8x16xf32> -> vector<8x16xf32>
    %cst_32 = arith.constant 5.000000e-01 : f32
    %71 = vector.broadcast %cst_32 : f32 to vector<8x16xf32>
    %72 = arith.mulf %71, %70 : vector<8x16xf32>
    %cst_33 = arith.constant 0.707106769 : f32
    %73 = vector.broadcast %cst_33 : f32 to vector<8x16xf32>
    %74 = arith.mulf %70, %73 : vector<8x16xf32>
    %75 = math.erf %74 : vector<8x16xf32>
    %cst_34 = arith.constant 1.000000e+00 : f32
    %76 = vector.broadcast %cst_34 : f32 to vector<8x16xf32>
    %77 = arith.addf %76, %75 : vector<8x16xf32>
    %78 = arith.mulf %72, %77 : vector<8x16xf32>
    %cst_35 = arith.constant dense<0.000000e+00> : vector<8x32xf32>
    %79 = tpu.matmul %78, %69, %cst_35 {dimension_numbers = #tpu.dot_dimension_numbers<[1], [0], [0], [1], [0, 0, 1, 1], [], []>} : vector<8x16xf32>, vector<16x32xf32>, vector<8x32xf32> -> vector<8x32xf32>
    %c0_36 = arith.constant 0 : index
    %c0_37 = arith.constant 0 : index
    %c0_38 = arith.constant 0 : index
    %80 = vector.load %arg8[%c0_36, %c0_37, %c0_38] : memref<1x8x32xf32, #tpu.memory_space<vmem>>, vector<1x8x32xf32>
    %81 = vector.shape_cast %80 : vector<1x8x32xf32> to vector<8x32xf32>
    %82 = vector.shape_cast %79 : vector<8x32xf32> to vector<1x8x32xf32>
    tpu.vector_store %arg8[%c0_36, %c0_37, %c0_38], %82 {strides = array<i32>} : memref<1x8x32xf32, #tpu.memory_space<vmem>>, vector<1x8x32xf32>,
    return
  }
  func.func @transform_0(%arg0: i32) -> (i32, i32, i32) {
    %c0_i32 = arith.constant 0 : i32
    %c0_i32_0 = arith.constant 0 : i32
    %c0_i32_1 = arith.constant 0 : i32
    return %arg0, %c0_i32, %c0_i32_0 : i32, i32, i32
  }
  func.func @transform_1(%arg0: i32) -> (i32, i32) {
    %c0_i32 = arith.constant 0 : i32
    %c0_i32_0 = arith.constant 0 : i32
    %c0_i32_1 = arith.constant 0 : i32
    return %c0_i32, %c0_i32_0 : i32, i32
  }
  func.func @transform_2(%arg0: i32) -> (i32, i32) {
    %c0_i32 = arith.constant 0 : i32
    %c0_i32_0 = arith.constant 0 : i32
    %c0_i32_1 = arith.constant 0 : i32
    return %c0_i32, %c0_i32_0 : i32, i32
  }
  func.func @transform_3(%arg0: i32) -> (i32, i32) {
    %c0_i32 = arith.constant 0 : i32
    %c0_i32_0 = arith.constant 0 : i32
    %c0_i32_1 = arith.constant 0 : i32
    return %c0_i32, %c0_i32_0 : i32, i32
  }
  func.func @transform_4(%arg0: i32) -> (i32, i32) {
    %c0_i32 = arith.constant 0 : i32
    %c0_i32_0 = arith.constant 0 : i32
    %c0_i32_1 = arith.constant 0 : i32
    return %c0_i32, %c0_i32_0 : i32, i32
  }
  func.func @transform_5(%arg0: i32) -> (i32, i32) {
    %c0_i32 = arith.constant 0 : i32
    %c0_i32_0 = arith.constant 0 : i32
    %c0_i32_1 = arith.constant 0 : i32
    return %c0_i32, %c0_i32_0 : i32, i32
  }
  func.func @transform_6(%arg0: i32) -> (i32, i32) {
    %c0_i32 = arith.constant 0 : i32
    %c0_i32_0 = arith.constant 0 : i32
    %c0_i32_1 = arith.constant 0 : i32
    return %c0_i32, %c0_i32_0 : i32, i32
  }
  func.func @transform_7(%arg0: i32) -> (i32, i32, i32) {
    %c0_i32 = arith.constant 0 : i32
    %c0_i32_0 = arith.constant 0 : i32
    %c0_i32_1 = arith.constant 0 : i32
    return %arg0, %c0_i32, %c0_i32_0 : i32, i32, i32
  }
}

</mosaic_0001>

<llo_original>
// kernel: tpu_custom_call.1
$region0: #{tpu_custom_call.1}
  #allocation0 [shape = 'u32[]', space=smem, size = 0x4, offset = 0x4, fixed_abs, tag = 'smem constant byte address 0x4 - core index']
  #allocation1 [shape = 'u32[144,128]{1,0:T(1,128)}', space=vmem, size = 0x12000, scoped, tag = 'internal scratch']
  %s0 = inlined_call_operand.vmem [shape: f32[4,8,32], index: 0, kind: input, shape index: {}]
  %s1 = inlined_call_operand.vmem [shape: f32[32,32], index: 1, kind: input, shape index: {}]
  %s2 = inlined_call_operand.vmem [shape: f32[256,32], index: 2, kind: input, shape index: {}]
  %s3 = inlined_call_operand.vmem [shape: f32[32,64], index: 3, kind: input, shape index: {}]
  %s4 = inlined_call_operand.vmem [shape: f32[64,32], index: 4, kind: input, shape index: {}]
  %s5 = inlined_call_operand.vmem [shape: f32[1,32], index: 5, kind: input, shape index: {}]
  %s6 = inlined_call_operand.vmem [shape: f32[1,32], index: 6, kind: input, shape index: {}]
  %s7 = inlined_call_operand.hbm [shape: f32[4,8,32], index: 7, kind: output, shape index: {}]
  %s8 = sld [smem:[#allocation0]]
  $region61: #{tpu_custom_call.1} parent=0
    _
  %s10 = ssub.s32 1, %s8
  %s11 = scalar_select 0, %s10, %s8
  $region1: #{tpu_custom_call.1} parent=0
    #allocation2 [shape = 'u8[8192]{0}', space=vmem, size = 0x2000, scoped, tag = 'output window, operand 0']
    #allocation3 [shape = 's32[2]{0}', space=sflag, size = 0x8, scoped, tag = 'scoped memory for tpu_custom_call.1']
    %12 = vsyncpa [#allocation3], 0
    %s13 = scalar_lea.sflag [#allocation3], 1
    %14 = vsyncpa %s13, 0
    loop: start=0, step=1, limit=6
    $region2: #{tpu_custom_call.1} parent=1 // loop_pre_header
      _
    $region3: #{tpu_custom_call.1} parent=1 // loop_header
      %s16 = sphi 0, %s20
      %p17 = scmp.ge.s32.totalorder %s16, 6
      %s26 = sphi 0, %s28
      %s29 = sphi 0, %s26
      %s30 = sphi 0, %s29
      %s46 = sphi 0, %s30
      %s50 = sphi 0, %s50
      %s52 = sphi 0, %s50
      %s53 = sphi 0, %s52
      %s67 = sphi 0, %s53
      %s71 = sphi 0, %s71
      %s73 = sphi 0, %s71
      %s74 = sphi 0, %s73
      %s88 = sphi 0, %s74
      %s92 = sphi 0, %s92
      %s94 = sphi 0, %s92
      %s95 = sphi 0, %s94
      %s109 = sphi 0, %s95
      %s113 = sphi 0, %s113
      %s115 = sphi 0, %s113
      %s116 = sphi 0, %s115
      %s130 = sphi 0, %s116
      %s134 = sphi 0, %s134
      %s136 = sphi 0, %s134
      %s137 = sphi 0, %s136
      %s151 = sphi 0, %s137
      %s155 = sphi 0, %s155
      %s157 = sphi 0, %s155
      %s158 = sphi 0, %s157
      %s172 = sphi 0, %s158
      %s178 = sphi 0, %s180
      %s181 = sphi 0, %s178
      %s182 = sphi 0, %s181
      %s198 = sphi 0, %s182
    $region4: #{tpu_custom_call.1} parent=1 // loop_header_branch
      %19 = sbr.rel (%p17) target = $region8
    $region5: #{tpu_custom_call.1} parent=1 // loop_body
      %s21 = ssub.s32 %s16, 1
      %s22 = ssub.s32 %s16, 2
      %s23 = sadd.s32 %s16, 1
      %s24 = ssub.s32 %s16, %s23
      %p25 = scmp.eq.s32.totalorder %s24, 0
      %s27 = sadd.s32 %s26, 1
      %s28 = scalar_select %p25, %s26, %s27
      %p31 = pneg %p25
      %p32 = scmp.eq.s32.totalorder %s16, 3
      %p33 = por %p31, %p32
      %p34 = scmp.ne.s32.totalorder %s26, %s29
      %p35 = scmp.eq.s32.totalorder %s16, 0
      %p36 = por %p34, %p35
      %p37 = scmp.ne.s32.totalorder %s26, %s29
      %p38 = scmp.eq.s32.totalorder %s21, 3
      %p39 = por %p37, %p38
      %p40 = scmp.ne.s32.totalorder %s29, %s30
      %p41 = scmp.eq.s32.totalorder %s21, 0
      %p42 = por %p40, %p41
      %p43 = scmp.ne.s32.totalorder %s29, %s30
      %p44 = scmp.eq.s32.totalorder %s22, 3
      %p45 = por %p43, %p44
      %p47 = scmp.ne.s32.totalorder %s30, %s46
      %p48 = scmp.eq.s32.totalorder %s22, 0
      %p49 = por %p47, %p48
      %s51 = sadd.s32 %s50, 1
      %p54 = scmp.eq.s32.totalorder %s16, 3
      %p55 = scmp.ne.s32.totalorder %s50, %s52
      %p56 = scmp.eq.s32.totalorder %s16, 0
      %p57 = por %p55, %p56
      %p58 = scmp.ne.s32.totalorder %s50, %s52
      %p59 = scmp.eq.s32.totalorder %s21, 3
      %p60 = por %p58, %p59
      %p61 = scmp.ne.s32.totalorder %s52, %s53
      %p62 = scmp.eq.s32.totalorder %s21, 0
      %p63 = por %p61, %p62
      %p64 = scmp.ne.s32.totalorder %s52, %s53
      %p65 = scmp.eq.s32.totalorder %s22, 3
      %p66 = por %p64, %p65
      %p68 = scmp.ne.s32.totalorder %s53, %s67
      %p69 = scmp.eq.s32.totalorder %s22, 0
      %p70 = por %p68, %p69
      %s72 = sadd.s32 %s71, 1
      %p75 = scmp.eq.s32.totalorder %s16, 3
      %p76 = scmp.ne.s32.totalorder %s71, %s73
      %p77 = scmp.eq.s32.totalorder %s16, 0
      %p78 = por %p76, %p77
      %p79 = scmp.ne.s32.totalorder %s71, %s73
      %p80 = scmp.eq.s32.totalorder %s21, 3
      %p81 = por %p79, %p80
      %p82 = scmp.ne.s32.totalorder %s73, %s74
      %p83 = scmp.eq.s32.totalorder %s21, 0
      %p84 = por %p82, %p83
      %p85 = scmp.ne.s32.totalorder %s73, %s74
      %p86 = scmp.eq.s32.totalorder %s22, 3
      %p87 = por %p85, %p86
      %p89 = scmp.ne.s32.totalorder %s74, %s88
      %p90 = scmp.eq.s32.totalorder %s22, 0
      %p91 = por %p89, %p90
      %s93 = sadd.s32 %s92, 1
      %p96 = scmp.eq.s32.totalorder %s16, 3
      %p97 = scmp.ne.s32.totalorder %s92, %s94
      %p98 = scmp.eq.s32.totalorder %s16, 0
      %p99 = por %p97, %p98
      %p100 = scmp.ne.s32.totalorder %s92, %s94
      %p101 = scmp.eq.s32.totalorder %s21, 3
      %p102 = por %p100, %p101
      %p103 = scmp.ne.s32.totalorder %s94, %s95
      %p104 = scmp.eq.s32.totalorder %s21, 0
      %p105 = por %p103, %p104
      %p106 = scmp.ne.s32.totalorder %s94, %s95
      %p107 = scmp.eq.s32.totalorder %s22, 3
      %p108 = por %p106, %p107
      %p110 = scmp.ne.s32.totalorder %s95, %s109
      %p111 = scmp.eq.s32.totalorder %s22, 0
      %p112 = por %p110, %p111
      %s114 = sadd.s32 %s113, 1
      %p117 = scmp.eq.s32.totalorder %s16, 3
      %p118 = scmp.ne.s32.totalorder %s113, %s115
      %p119 = scmp.eq.s32.totalorder %s16, 0
      %p120 = por %p118, %p119
      %p121 = scmp.ne.s32.totalorder %s113, %s115
      %p122 = scmp.eq.s32.totalorder %s21, 3
      %p123 = por %p121, %p122
      %p124 = scmp.ne.s32.totalorder %s115, %s116
      %p125 = scmp.eq.s32.totalorder %s21, 0
      %p126 = por %p124, %p125
      %p127 = scmp.ne.s32.totalorder %s115, %s116
      %p128 = scmp.eq.s32.totalorder %s22, 3
      %p129 = por %p127, %p128
      %p131 = scmp.ne.s32.totalorder %s116, %s130
      %p132 = scmp.eq.s32.totalorder %s22, 0
      %p133 = por %p131, %p132
      %s135 = sadd.s32 %s134, 1
      %p138 = scmp.eq.s32.totalorder %s16, 3
      %p139 = scmp.ne.s32.totalorder %s134, %s136
      %p140 = scmp.eq.s32.totalorder %s16, 0
      %p141 = por %p139, %p140
      %p142 = scmp.ne.s32.totalorder %s134, %s136
      %p143 = scmp.eq.s32.totalorder %s21, 3
      %p144 = por %p142, %p143
      %p145 = scmp.ne.s32.totalorder %s136, %s137
      %p146 = scmp.eq.s32.totalorder %s21, 0
      %p147 = por %p145, %p146
      %p148 = scmp.ne.s32.totalorder %s136, %s137
      %p149 = scmp.eq.s32.totalorder %s22, 3
      %p150 = por %p148, %p149
      %p152 = scmp.ne.s32.totalorder %s137, %s151
      %p153 = scmp.eq.s32.totalorder %s22, 0
      %p154 = por %p152, %p153
      %s156 = sadd.s32 %s155, 1
      %p159 = scmp.eq.s32.totalorder %s16, 3
      %p160 = scmp.ne.s32.totalorder %s155, %s157
      %p161 = scmp.eq.s32.totalorder %s16, 0
      %p162 = por %p160, %p161
      %p163 = scmp.ne.s32.totalorder %s155, %s157
      %p164 = scmp.eq.s32.totalorder %s21, 3
      %p165 = por %p163, %p164
      %p166 = scmp.ne.s32.totalorder %s157, %s158
      %p167 = scmp.eq.s32.totalorder %s21, 0
      %p168 = por %p166, %p167
      %p169 = scmp.ne.s32.totalorder %s157, %s158
      %p170 = scmp.eq.s32.totalorder %s22, 3
      %p171 = por %p169, %p170
      %p173 = scmp.ne.s32.totalorder %s158, %s172
      %p174 = scmp.eq.s32.totalorder %s22, 0
      %p175 = por %p173, %p174
      %s176 = ssub.s32 %s16, %s23
      %p177 = scmp.eq.s32.totalorder %s176, 0
      %s179 = sadd.s32 %s178, 1
      %s180 = scalar_select %p177, %s178, %s179
      %p183 = pneg %p177
      %p184 = scmp.eq.s32.totalorder %s16, 3
      %p185 = por %p183, %p184
      %p186 = scmp.ne.s32.totalorder %s178, %s181
      %p187 = scmp.eq.s32.totalorder %s16, 0
      %p188 = por %p186, %p187
      %p189 = scmp.ne.s32.totalorder %s178, %s181
      %p190 = scmp.eq.s32.totalorder %s21, 3
      %p191 = por %p189, %p190
      %p192 = scmp.ne.s32.totalorder %s181, %s182
      %p193 = scmp.eq.s32.totalorder %s21, 0
      %p194 = por %p192, %p193
      %p195 = scmp.ne.s32.totalorder %s181, %s182
      %p196 = scmp.eq.s32.totalorder %s22, 3
      %p197 = por %p195, %p196
      %p199 = scmp.ne.s32.totalorder %s182, %s198
      %p200 = scmp.eq.s32.totalorder %s22, 0
      %p201 = por %p199, %p200
      %p202 = scmp.le.s32.totalorder 1, %s16
      %p203 = scmp.lt.s32.totalorder %s16, 5
      %p204 = pnand %p202, %p203
      %p205 = pneg %p204
      // Predicated region
      $region9: #{tpu_custom_call.1} parent=5 // pred_check
        _
      $region10: #{tpu_custom_call.1} parent=5 // pred_check_branch
        %207 = sbr.rel (%p204) target = $region12
      $region11: #{tpu_custom_call.1} parent=5 // pred_region
        %s208 = ssub.s32 %s16, 1
        // Predicated region
        $region13: #{tpu_custom_call.1} parent=11 // pred_check
          %p209 = pneg %p63
        $region14: #{tpu_custom_call.1} parent=11 // pred_check_branch
          %211 = sbr.rel (%p209) target = $region16
        $region15: #{tpu_custom_call.1} parent=11 // pred_region
          _
        $region16: #{tpu_custom_call.1} parent=11 // pred_fallthru
          _
        // Predicated region
        $region17: #{tpu_custom_call.1} parent=11 // pred_check
          %p212 = pneg %p84
        $region18: #{tpu_custom_call.1} parent=11 // pred_check_branch
          %214 = sbr.rel (%p212) target = $region20
        $region19: #{tpu_custom_call.1} parent=11 // pred_region
          _
        $region20: #{tpu_custom_call.1} parent=11 // pred_fallthru
          _
        // Predicated region
        $region21: #{tpu_custom_call.1} parent=11 // pred_check
          %p215 = pneg %p105
        $region22: #{tpu_custom_call.1} parent=11 // pred_check_branch
          %217 = sbr.rel (%p215) target = $region24
        $region23: #{tpu_custom_call.1} parent=11 // pred_region
          _
        $region24: #{tpu_custom_call.1} parent=11 // pred_fallthru
          _
        // Predicated region
        $region25: #{tpu_custom_call.1} parent=11 // pred_check
          %p218 = pneg %p126
        $region26: #{tpu_custom_call.1} parent=11 // pred_check_branch
          %220 = sbr.rel (%p218) target = $region28
        $region27: #{tpu_custom_call.1} parent=11 // pred_region
          _
        $region28: #{tpu_custom_call.1} parent=11 // pred_fallthru
          _
        // Predicated region
        $region29: #{tpu_custom_call.1} parent=11 // pred_check
          %p221 = pneg %p147
        $region30: #{tpu_custom_call.1} parent=11 // pred_check_branch
          %223 = sbr.rel (%p221) target = $region32
        $region31: #{tpu_custom_call.1} parent=11 // pred_region
          _
        $region32: #{tpu_custom_call.1} parent=11 // pred_fallthru
          _
        // Predicated region
        $region33: #{tpu_custom_call.1} parent=11 // pred_check
          %p224 = pneg %p168
        $region34: #{tpu_custom_call.1} parent=11 // pred_check_branch
          %226 = sbr.rel (%p224) target = $region36
        $region35: #{tpu_custom_call.1} parent=11 // pred_region
          _
        $region36: #{tpu_custom_call.1} parent=11 // pred_fallthru
          _
      $region12: #{tpu_custom_call.1} parent=5 // pred_fallthru
        _
      %p227 = scmp.lt.s32.totalorder %s16, 4
      // Predicated region
      $region37: #{tpu_custom_call.1} parent=5 // pred_check
        %p228 = pneg %p227
      $region38: #{tpu_custom_call.1} parent=5 // pred_check_branch
        %230 = sbr.rel (%p228) target = $region40
      $region39: #{tpu_custom_call.1} parent=5 // pred_region
        // Predicated region
        $region41: #{tpu_custom_call.1} parent=39 // pred_check
          %p231 = pneg %p36
        $region42: #{tpu_custom_call.1} parent=39 // pred_check_branch
          %233 = sbr.rel (%p231) target = $region44
        $region43: #{tpu_custom_call.1} parent=39 // pred_region
          %p234 = scmp.lt.s32.totalorder %s16, 3
          %s235 = scalar_select %p234, %s16, 3
          %s236 = smul.addr %s235, 8
          %s237 = scalar_lea.vmem %s0, %s236
        $region44: #{tpu_custom_call.1} parent=39 // pred_fallthru
          _
      $region40: #{tpu_custom_call.1} parent=5 // pred_fallthru
        _
      %p238 = scmp.le.s32.totalorder 1, %s16
      %p239 = scmp.lt.s32.totalorder %s16, 5
      %p240 = pnand %p238, %p239
      %p241 = pneg %p240
      // Predicated region
      $region45: #{tpu_custom_call.1} parent=5 // pred_check
        _
      $region46: #{tpu_custom_call.1} parent=5 // pred_check_branch
        %243 = sbr.rel (%p240) target = $region48
      $region47: #{tpu_custom_call.1} parent=5 // pred_region
        %s244 = ssub.s32 %s16, 1
        %p245 = scmp.lt.s32.totalorder %s21, 3
        %s246 = scalar_select %p245, %s21, 3
        %s247 = smul.addr %s246, 8
        %s248 = scalar_lea.vmem %s0, %s247
        %p249 = pneg %p42
        %p250 = pneg %p39
        %p251 = pneg %p63
        %p252 = pneg %p60
        %p253 = pneg %p84
        %p254 = pneg %p81
        %p255 = pneg %p105
        %p256 = pneg %p102
        %p257 = pneg %p126
        %p258 = pneg %p123
        %p259 = pneg %p147
        %p260 = pneg %p144
        %p261 = pneg %p168
        %p262 = pneg %p165
        %p263 = pneg %p194
        %p264 = pneg %p191
        %s265 = sand.u32 %s181, 1
        %s266 = scalar_lea.sflag [#allocation3], %s265
        %s267 = sand.u32 %s181, 1
        %s268 = smul.addr %s267, 8
        %s269 = scalar_lea.vmem [#allocation2], %s268
        %p270 = scmp.lt.s32.totalorder %s21, 3
        %s271 = scalar_select %p270, %s21, 3
        %s272 = smul.addr %s271, 8
        %s273 = scalar_lea.vmem %s0, %s272
        %v274 = vld [vmem:[%s1] sm:$0xff]
        %v275 = vld [vmem:[%s1 + $0x8] sm:$0xff]
        %v276 = vld [vmem:[%s1 + $0x10] sm:$0xff]
        %v277 = vld [vmem:[%s1 + $0x18] sm:$0xff]
        %v278 = vld [vmem:[%s5] sm:$0x1]
        %v279 = vld [vmem:[%s6] sm:$0x1]
        %v280 = vld [vmem:[%s2] sm:$0xff]
        %v281 = vld [vmem:[%s2 + $0x8] sm:$0xff]
        %v282 = vld [vmem:[%s2 + $0x10] sm:$0xff]
        %v283 = vld [vmem:[%s2 + $0x18] sm:$0xff]
        %v284 = vld [vmem:[%s2 + $0x20] sm:$0xff]
        %v285 = vld [vmem:[%s2 + $0x28] sm:$0xff]
        %v286 = vld [vmem:[%s2 + $0x30] sm:$0xff]
        %v287 = vld [vmem:[%s2 + $0x38] sm:$0xff]
        %v288 = vld [vmem:[%s2 + $0x40] sm:$0xff]
        %v289 = vld [vmem:[%s2 + $0x48] sm:$0xff]
        %v290 = vld [vmem:[%s2 + $0x50] sm:$0xff]
        %v291 = vld [vmem:[%s2 + $0x58] sm:$0xff]
        %v292 = vld [vmem:[%s2 + $0x60] sm:$0xff]
        %v293 = vld [vmem:[%s2 + $0x68] sm:$0xff]
        %v294 = vld [vmem:[%s2 + $0x70] sm:$0xff]
        %v295 = vld [vmem:[%s2 + $0x78] sm:$0xff]
        %v296 = vld [vmem:[%s2 + $0x80] sm:$0xff]
        %v297 = vld [vmem:[%s2 + $0x88] sm:$0xff]
        %v298 = vld [vmem:[%s2 + $0x90] sm:$0xff]
        %v299 = vld [vmem:[%s2 + $0x98] sm:$0xff]
        %v300 = vld [vmem:[%s2 + $0xa0] sm:$0xff]
        %v301 = vld [vmem:[%s2 + $0xa8] sm:$0xff]
        %v302 = vld [vmem:[%s2 + $0xb0] sm:$0xff]
        %v303 = vld [vmem:[%s2 + $0xb8] sm:$0xff]
        %v304 = vld [vmem:[%s2 + $0xc0] sm:$0xff]
        %v305 = vld [vmem:[%s2 + $0xc8] sm:$0xff]
        %v306 = vld [vmem:[%s2 + $0xd0] sm:$0xff]
        %v307 = vld [vmem:[%s2 + $0xd8] sm:$0xff]
        %v308 = vld [vmem:[%s2 + $0xe0] sm:$0xff]
        %v309 = vld [vmem:[%s2 + $0xe8] sm:$0xff]
        %v310 = vld [vmem:[%s2 + $0xf0] sm:$0xff]
        %v311 = vld [vmem:[%s2 + $0xf8] sm:$0xff]
        %v312 = vld [vmem:[%s3] sm:$0xff]
        %v313 = vld [vmem:[%s3 + $0x8] sm:$0xff]
        %v314 = vld [vmem:[%s3 + $0x10] sm:$0xff]
        %v315 = vld [vmem:[%s3 + $0x18] sm:$0xff]
        %v316 = vld [vmem:[%s4] sm:$0xff]
        %v317 = vld [vmem:[%s4 + $0x8] sm:$0xff]
        %v318 = vld [vmem:[%s4 + $0x10] sm:$0xff]
        %v319 = vld [vmem:[%s4 + $0x18] sm:$0xff]
        %v320 = vld [vmem:[%s4 + $0x20] sm:$0xff]
        %v321 = vld [vmem:[%s4 + $0x28] sm:$0xff]
        %v322 = vld [vmem:[%s4 + $0x30] sm:$0xff]
        %v323 = vld [vmem:[%s4 + $0x38] sm:$0xff]
        %v324 = vld [vmem:[%s273] sm:$0xff]
        %vm325 = vcmask 261120
        %v326 = vsel %vm325, %v324, 0.0
        %327 = vadd.xlane.f32.xlu0 %v326
        %v328 = vpop.xlane.xlu0 %327
        %v329 = vrcp.pop 32.0
        %v330 = vmul.f32 %v328, %v329
        %v331 = vsub.f32 %v324, %v330
        %v332 = vmul.f32 %v331, %v331
        %v333 = vsel %vm325, %v332, 0.0
        %334 = vadd.xlane.f32.xlu0 %v333
        %v335 = vpop.xlane.xlu0 %334
        %v336 = vmul.f32 %v335, %v329
        %v337 = vadd.f32 %v336, 1e-05
        %v338 = vrsqrt.pop %v337
        %v339 = vmul.f32 %v331, %v338
        %v341 = vlaneseq
        %v342 = vshrl.u32 %v341, 7
        %v343 = vsub.s32 0, %v342
        %v344 = vrot.slane %v278, %v343
        %v346 = vmul.f32 %v339, %v344
        %v348 = vlaneseq
        %v349 = vshrl.u32 %v348, 7
        %v350 = vsub.s32 0, %v349
        %v351 = vrot.slane %v279, %v350
        %v353 = vadd.f32 %v346, %v351
        %v355 = vsel %vm325, %v280, 0
        %v358 = vsel %vm325, %v281, 0
        %v361 = vsel %vm325, %v282, 0
        %v364 = vsel %vm325, %v283, 0
        %v367 = vsel %vm325, %v284, 0
        %v370 = vsel %vm325, %v285, 0
        %v373 = vsel %vm325, %v286, 0
        %v376 = vsel %vm325, %v287, 0
        %v379 = vsel %vm325, %v288, 0
        %v382 = vsel %vm325, %v289, 0
        %v385 = vsel %vm325, %v290, 0
        %v388 = vsel %vm325, %v291, 0
        %v391 = vsel %vm325, %v292, 0
        %v394 = vsel %vm325, %v293, 0
        %v397 = vsel %vm325, %v294, 0
        %v400 = vsel %vm325, %v295, 0
        %v403 = vsel %vm325, %v296, 0
        %v406 = vsel %vm325, %v297, 0
        %v409 = vsel %vm325, %v298, 0
        %v412 = vsel %vm325, %v299, 0
        %v415 = vsel %vm325, %v300, 0
        %v418 = vsel %vm325, %v301, 0
        %v421 = vsel %vm325, %v302, 0
        %v424 = vsel %vm325, %v303, 0
        %v427 = vsel %vm325, %v304, 0
        %v430 = vsel %vm325, %v305, 0
        %v433 = vsel %vm325, %v306, 0
        %v436 = vsel %vm325, %v307, 0
        %v439 = vsel %vm325, %v308, 0
        %v442 = vsel %vm325, %v309, 0
        %v445 = vsel %vm325, %v310, 0
        %v448 = vsel %vm325, %v311, 0
        %v451 = vsel %vm325, %v353, 0
        %453 = vmatprep.subr.mxu0 0.0
        %454 = vmatpush1.xpose.msra.mxu0 0.0
        %455 = vmatprep.subr.mxu0 0.0
        %456 = vmatpush1.xpose.msra.mxu0 0.0
        %457 = vmatprep.subr.mxu0 0.0
        %458 = vmatpush1.xpose.msra.mxu0 0.0
        %459 = vmatprep.subr.mxu0 0.0
        %460 = vmatpush1.xpose.msra.mxu0 0.0
        %461 = vmatprep.subr.mxu0 0.0
        %462 = vmatpush1.xpose.msra.mxu0 0.0
        %463 = vmatprep.subr.mxu0 0.0
        %464 = vmatpush1.xpose.msra.mxu0 0.0
        %465 = vmatprep.subr.mxu0 0.0
        %466 = vmatpush1.xpose.msra.mxu0 0.0
        %467 = vmatprep.subr.mxu0 0.0
        %468 = vmatpush1.xpose.msra.mxu0 0.0
        %469 = vmatprep.subr.mxu0 0.0
        %470 = vmatpush1.xpose.msra.mxu0 0.0
        %471 = vmatprep.subr.mxu0 0.0
        %472 = vmatpush1.xpose.msra.mxu0 0.0
        %473 = vmatprep.subr.mxu0 0.0
        %474 = vmatpush1.xpose.msra.mxu0 0.0
        %475 = vmatprep.subr.mxu0 0.0
        %476 = vmatpush1.xpose.msra.mxu0 0.0
        %477 = vmatprep.subr.mxu0 0.0
        %478 = vmatpush1.xpose.msra.mxu0 0.0
        %479 = vmatprep.subr.mxu0 0.0
        %480 = vmatpush1.xpose.msra.mxu0 0.0
        %481 = vmatprep.subr.mxu0 0.0
        %482 = vmatpush1.xpose.msra.mxu0 0.0
        %483 = vmatprep.subr.mxu0 0.0
        %484 = vmatpush1.xpose.msra.mxu0 %v451
        %485 = vmatprep.subr.mxu0 0.0
        %486 = vmatpush2.xpose.msra.mxu0 0.0
        %487 = vmatprep.subr.mxu0 0.0
        %488 = vmatpush2.xpose.msra.mxu0 0.0
        %489 = vmatprep.subr.mxu0 0.0
        %490 = vmatpush2.xpose.msra.mxu0 0.0
        %491 = vmatprep.subr.mxu0 0.0
        %492 = vmatpush2.xpose.msra.mxu0 0.0
        %493 = vmatprep.subr.mxu0 0.0
        %494 = vmatpush2.xpose.msra.mxu0 0.0
        %495 = vmatprep.subr.mxu0 0.0
        %496 = vmatpush2.xpose.msra.mxu0 0.0
        %497 = vmatprep.subr.mxu0 0.0
        %498 = vmatpush2.xpose.msra.mxu0 0.0
        %499 = vmatprep.subr.mxu0 0.0
        %500 = vmatpush2.xpose.msra.mxu0 0.0
        %501 = vmatprep.subr.mxu0 0.0
        %502 = vmatpush2.xpose.msra.mxu0 0.0
        %503 = vmatprep.subr.mxu0 0.0
        %504 = vmatpush2.xpose.msra.mxu0 0.0
        %505 = vmatprep.subr.mxu0 0.0
        %506 = vmatpush2.xpose.msra.mxu0 0.0
        %507 = vmatprep.subr.mxu0 0.0
        %508 = vmatpush2.xpose.msra.mxu0 0.0
        %509 = vmatprep.subr.mxu0 0.0
        %510 = vmatpush2.xpose.msra.mxu0 0.0
        %511 = vmatprep.subr.mxu0 0.0
        %512 = vmatpush2.xpose.msra.mxu0 0.0
        %513 = vmatprep.subr.mxu0 0.0
        %514 = vmatpush2.xpose.msra.mxu0 0.0
        %515 = vmatprep.subr.mxu0 0.0
        %516 = vmatpush2.xpose.msra.mxu0 0.0
        %517 = vmatprep.mubr.f32.mxu0 0.0
        %518 = vmatmul.mubr.f32.gmra.mxu0 %v355
        %v519 = vpop.f32.mrf.mxu0
        %v520 = vadd.f32 0.0, %v519
        %v521 = vpop.f32.mrf.mxu0
        %522 = vmatprep.mubr.f32.mxu0 0.0
        %523 = vmatmul.mubr.f32.gmra.mxu0 %v358
        %v524 = vpop.f32.mrf.mxu0
        %v525 = vadd.f32 0.0, %v524
        %v526 = vpop.f32.mrf.mxu0
        %527 = vmatprep.mubr.f32.mxu0 0.0
        %528 = vmatmul.mubr.f32.gmra.mxu0 %v361
        %v529 = vpop.f32.mrf.mxu0
        %v530 = vadd.f32 0.0, %v529
        %v531 = vpop.f32.mrf.mxu0
        %532 = vmatprep.mubr.f32.mxu0 0.0
        %533 = vmatmul.mubr.f32.gmra.mxu0 %v364
        %v534 = vpop.f32.mrf.mxu0
        %v535 = vadd.f32 0.0, %v534
        %v536 = vpop.f32.mrf.mxu0
        %537 = vmatprep.mubr.f32.mxu0 0.0
        %538 = vmatmul.mubr.f32.gmra.mxu0 %v367
        %v539 = vpop.f32.mrf.mxu0
        %v540 = vadd.f32 0.0, %v539
        %v541 = vpop.f32.mrf.mxu0
        %542 = vmatprep.mubr.f32.mxu0 0.0
        %543 = vmatmul.mubr.f32.gmra.mxu0 %v370
        %v544 = vpop.f32.mrf.mxu0
        %v545 = vadd.f32 0.0, %v544
        %v546 = vpop.f32.mrf.mxu0
        %547 = vmatprep.mubr.f32.mxu0 0.0
        %548 = vmatmul.mubr.f32.gmra.mxu0 %v373
        %v549 = vpop.f32.mrf.mxu0
        %v550 = vadd.f32 0.0, %v549
        %v551 = vpop.f32.mrf.mxu0
        %552 = vmatprep.mubr.f32.mxu0 0.0
        %553 = vmatmul.mubr.f32.gmra.mxu0 %v376
        %v554 = vpop.f32.mrf.mxu0
        %v555 = vadd.f32 0.0, %v554
        %v556 = vpop.f32.mrf.mxu0
        %557 = vmatprep.mubr.f32.mxu0 0.0
        %558 = vmatmul.mubr.f32.gmra.mxu0 %v379
        %v559 = vpop.f32.mrf.mxu0
        %v560 = vadd.f32 0.0, %v559
        %v561 = vpop.f32.mrf.mxu0
        %562 = vmatprep.mubr.f32.mxu0 0.0
        %563 = vmatmul.mubr.f32.gmra.mxu0 %v382
        %v564 = vpop.f32.mrf.mxu0
        %v565 = vadd.f32 0.0, %v564
        %v566 = vpop.f32.mrf.mxu0
        %567 = vmatprep.mubr.f32.mxu0 0.0
        %568 = vmatmul.mubr.f32.gmra.mxu0 %v385
        %v569 = vpop.f32.mrf.mxu0
        %v570 = vadd.f32 0.0, %v569
        %v571 = vpop.f32.mrf.mxu0
        %572 = vmatprep.mubr.f32.mxu0 0.0
        %573 = vmatmul.mubr.f32.gmra.mxu0 %v388
        %v574 = vpop.f32.mrf.mxu0
        %v575 = vadd.f32 0.0, %v574
        %v576 = vpop.f32.mrf.mxu0
        %577 = vmatprep.mubr.f32.mxu0 0.0
        %578 = vmatmul.mubr.f32.gmra.mxu0 %v391
        %v579 = vpop.f32.mrf.mxu0
        %v580 = vadd.f32 0.0, %v579
        %v581 = vpop.f32.mrf.mxu0
        %582 = vmatprep.mubr.f32.mxu0 0.0
        %583 = vmatmul.mubr.f32.gmra.mxu0 %v394
        %v584 = vpop.f32.mrf.mxu0
        %v585 = vadd.f32 0.0, %v584
        %v586 = vpop.f32.mrf.mxu0
        %587 = vmatprep.mubr.f32.mxu0 0.0
        %588 = vmatmul.mubr.f32.gmra.mxu0 %v397
        %v589 = vpop.f32.mrf.mxu0
        %v590 = vadd.f32 0.0, %v589
        %v591 = vpop.f32.mrf.mxu0
        %592 = vmatprep.mubr.f32.mxu0 0.0
        %593 = vmatmul.mubr.f32.gmra.mxu0 %v400
        %v594 = vpop.f32.mrf.mxu0
        %v595 = vadd.f32 0.0, %v594
        %v596 = vpop.f32.mrf.mxu0
        %597 = vmatprep.mubr.f32.mxu0 0.0
        %598 = vmatmul.mubr.f32.gmra.mxu0 %v403
        %v599 = vpop.f32.mrf.mxu0
        %v600 = vadd.f32 0.0, %v599
        %v601 = vpop.f32.mrf.mxu0
        %602 = vmatprep.mubr.f32.mxu0 0.0
        %603 = vmatmul.mubr.f32.gmra.mxu0 %v406
        %v604 = vpop.f32.mrf.mxu0
        %v605 = vadd.f32 0.0, %v604
        %v606 = vpop.f32.mrf.mxu0
        %607 = vmatprep.mubr.f32.mxu0 0.0
        %608 = vmatmul.mubr.f32.gmra.mxu0 %v409
        %v609 = vpop.f32.mrf.mxu0
        %v610 = vadd.f32 0.0, %v609
        %v611 = vpop.f32.mrf.mxu0
        %612 = vmatprep.mubr.f32.mxu0 0.0
        %613 = vmatmul.mubr.f32.gmra.mxu0 %v412
        %v614 = vpop.f32.mrf.mxu0
        %v615 = vadd.f32 0.0, %v614
        %v616 = vpop.f32.mrf.mxu0
        %617 = vmatprep.mubr.f32.mxu0 0.0
        %618 = vmatmul.mubr.f32.gmra.mxu0 %v415
        %v619 = vpop.f32.mrf.mxu0
        %v620 = vadd.f32 0.0, %v619
        %v621 = vpop.f32.mrf.mxu0
        %622 = vmatprep.mubr.f32.mxu0 0.0
        %623 = vmatmul.mubr.f32.gmra.mxu0 %v418
        %v624 = vpop.f32.mrf.mxu0
        %v625 = vadd.f32 0.0, %v624
        %v626 = vpop.f32.mrf.mxu0
        %627 = vmatprep.mubr.f32.mxu0 0.0
        %628 = vmatmul.mubr.f32.gmra.mxu0 %v421
        %v629 = vpop.f32.mrf.mxu0
        %v630 = vadd.f32 0.0, %v629
        %v631 = vpop.f32.mrf.mxu0
        %632 = vmatprep.mubr.f32.mxu0 0.0
        %633 = vmatmul.mubr.f32.gmra.mxu0 %v424
        %v634 = vpop.f32.mrf.mxu0
        %v635 = vadd.f32 0.0, %v634
        %v636 = vpop.f32.mrf.mxu0
        %637 = vmatprep.mubr.f32.mxu0 0.0
        %638 = vmatmul.mubr.f32.gmra.mxu0 %v427
        %v639 = vpop.f32.mrf.mxu0
        %v640 = vadd.f32 0.0, %v639
        %v641 = vpop.f32.mrf.mxu0
        %642 = vmatprep.mubr.f32.mxu0 0.0
        %643 = vmatmul.mubr.f32.gmra.mxu0 %v430
        %v644 = vpop.f32.mrf.mxu0
        %v645 = vadd.f32 0.0, %v644
        %v646 = vpop.f32.mrf.mxu0
        %647 = vmatprep.mubr.f32.mxu0 0.0
        %648 = vmatmul.mubr.f32.gmra.mxu0 %v433
        %v649 = vpop.f32.mrf.mxu0
        %v650 = vadd.f32 0.0, %v649
        %v651 = vpop.f32.mrf.mxu0
        %652 = vmatprep.mubr.f32.mxu0 0.0
        %653 = vmatmul.mubr.f32.gmra.mxu0 %v436
        %v654 = vpop.f32.mrf.mxu0
        %v655 = vadd.f32 0.0, %v654
        %v656 = vpop.f32.mrf.mxu0
        %657 = vmatprep.mubr.f32.mxu0 0.0
        %658 = vmatmul.mubr.f32.gmra.mxu0 %v439
        %v659 = vpop.f32.mrf.mxu0
        %v660 = vadd.f32 0.0, %v659
        %v661 = vpop.f32.mrf.mxu0
        %662 = vmatprep.mubr.f32.mxu0 0.0
        %663 = vmatmul.mubr.f32.gmra.mxu0 %v442
        %v664 = vpop.f32.mrf.mxu0
        %v665 = vadd.f32 0.0, %v664
        %v666 = vpop.f32.mrf.mxu0
        %667 = vmatprep.mubr.f32.mxu0 0.0
        %668 = vmatmul.mubr.f32.gmra.mxu0 %v445
        %v669 = vpop.f32.mrf.mxu0
        %v670 = vadd.f32 0.0, %v669
        %v671 = vpop.f32.mrf.mxu0
        %672 = vmatprep.mubr.f32.mxu0 0.0
        %673 = vmatmul.mubr.f32.gmra.mxu0 %v448
        %v674 = vpop.f32.mrf.mxu0
        %v675 = vadd.f32 0.0, %v674
        %v676 = vpop.f32.mrf.mxu0
        %677 = vdwg.mxu0
        %vm678 = vcmask 64512
        %v679 = vsel %vm678, %v520, -inf
        %680 = vmax.xlane.f32.xlu0 %v679
        %v681 = vpop.xlane.xlu0 %680
        %v682 = vsel %vm678, %v525, -inf
        %683 = vmax.xlane.f32.xlu0 %v682
        %v684 = vpop.xlane.xlu0 %683
        %v685 = vsel %vm678, %v530, -inf
        %686 = vmax.xlane.f32.xlu0 %v685
        %v687 = vpop.xlane.xlu0 %686
        %v688 = vsel %vm678, %v535, -inf
        %689 = vmax.xlane.f32.xlu0 %v688
        %v690 = vpop.xlane.xlu0 %689
        %v691 = vsel %vm678, %v540, -inf
        %692 = vmax.xlane.f32.xlu0 %v691
        %v693 = vpop.xlane.xlu0 %692
        %v694 = vsel %vm678, %v545, -inf
        %695 = vmax.xlane.f32.xlu0 %v694
        %v696 = vpop.xlane.xlu0 %695
        %v697 = vsel %vm678, %v550, -inf
        %698 = vmax.xlane.f32.xlu0 %v697
        %v699 = vpop.xlane.xlu0 %698
        %v700 = vsel %vm678, %v555, -inf
        %701 = vmax.xlane.f32.xlu0 %v700
        %v702 = vpop.xlane.xlu0 %701
        %v703 = vsel %vm678, %v560, -inf
        %704 = vmax.xlane.f32.xlu0 %v703
        %v705 = vpop.xlane.xlu0 %704
        %v706 = vsel %vm678, %v565, -inf
        %707 = vmax.xlane.f32.xlu0 %v706
        %v708 = vpop.xlane.xlu0 %707
        %v709 = vsel %vm678, %v570, -inf
        %710 = vmax.xlane.f32.xlu0 %v709
        %v711 = vpop.xlane.xlu0 %710
        %v712 = vsel %vm678, %v575, -inf
        %713 = vmax.xlane.f32.xlu0 %v712
        %v714 = vpop.xlane.xlu0 %713
        %v715 = vsel %vm678, %v580, -inf
        %716 = vmax.xlane.f32.xlu0 %v715
        %v717 = vpop.xlane.xlu0 %716
        %v718 = vsel %vm678, %v585, -inf
        %719 = vmax.xlane.f32.xlu0 %v718
        %v720 = vpop.xlane.xlu0 %719
        %v721 = vsel %vm678, %v590, -inf
        %722 = vmax.xlane.f32.xlu0 %v721
        %v723 = vpop.xlane.xlu0 %722
        %v724 = vsel %vm678, %v595, -inf
        %725 = vmax.xlane.f32.xlu0 %v724
        %v726 = vpop.xlane.xlu0 %725
        %v727 = vsel %vm678, %v600, -inf
        %728 = vmax.xlane.f32.xlu0 %v727
        %v729 = vpop.xlane.xlu0 %728
        %v730 = vsel %vm678, %v605, -inf
        %731 = vmax.xlane.f32.xlu0 %v730
        %v732 = vpop.xlane.xlu0 %731
        %v733 = vsel %vm678, %v610, -inf
        %734 = vmax.xlane.f32.xlu0 %v733
        %v735 = vpop.xlane.xlu0 %734
        %v736 = vsel %vm678, %v615, -inf
        %737 = vmax.xlane.f32.xlu0 %v736
        %v738 = vpop.xlane.xlu0 %737
        %v739 = vsel %vm678, %v620, -inf
        %740 = vmax.xlane.f32.xlu0 %v739
        %v741 = vpop.xlane.xlu0 %740
        %v742 = vsel %vm678, %v625, -inf
        %743 = vmax.xlane.f32.xlu0 %v742
        %v744 = vpop.xlane.xlu0 %743
        %v745 = vsel %vm678, %v630, -inf
        %746 = vmax.xlane.f32.xlu0 %v745
        %v747 = vpop.xlane.xlu0 %746
        %v748 = vsel %vm678, %v635, -inf
        %749 = vmax.xlane.f32.xlu0 %v748
        %v750 = vpop.xlane.xlu0 %749
        %v751 = vsel %vm678, %v640, -inf
        %752 = vmax.xlane.f32.xlu0 %v751
        %v753 = vpop.xlane.xlu0 %752
        %v754 = vsel %vm678, %v645, -inf
        %755 = vmax.xlane.f32.xlu0 %v754
        %v756 = vpop.xlane.xlu0 %755
        %v757 = vsel %vm678, %v650, -inf
        %758 = vmax.xlane.f32.xlu0 %v757
        %v759 = vpop.xlane.xlu0 %758
        %v760 = vsel %vm678, %v655, -inf
        %761 = vmax.xlane.f32.xlu0 %v760
        %v762 = vpop.xlane.xlu0 %761
        %v763 = vsel %vm678, %v660, -inf
        %764 = vmax.xlane.f32.xlu0 %v763
        %v765 = vpop.xlane.xlu0 %764
        %v766 = vsel %vm678, %v665, -inf
        %767 = vmax.xlane.f32.xlu0 %v766
        %v768 = vpop.xlane.xlu0 %767
        %v769 = vsel %vm678, %v670, -inf
        %770 = vmax.xlane.f32.xlu0 %v769
        %v771 = vpop.xlane.xlu0 %770
        %v772 = vsel %vm678, %v675, -inf
        %773 = vmax.xlane.f32.xlu0 %v772
        %v774 = vpop.xlane.xlu0 %773
        %v775 = vsub.f32 %v520, %v681
        %v776 = vsub.f32 %v525, %v684
        %v777 = vsub.f32 %v530, %v687
        %v778 = vsub.f32 %v535, %v690
        %v779 = vsub.f32 %v540, %v693
        %v780 = vsub.f32 %v545, %v696
        %v781 = vsub.f32 %v550, %v699
        %v782 = vsub.f32 %v555, %v702
        %v783 = vsub.f32 %v560, %v705
        %v784 = vsub.f32 %v565, %v708
        %v785 = vsub.f32 %v570, %v711
        %v786 = vsub.f32 %v575, %v714
        %v787 = vsub.f32 %v580, %v717
        %v788 = vsub.f32 %v585, %v720
        %v789 = vsub.f32 %v590, %v723
        %v790 = vsub.f32 %v595, %v726
        %v791 = vsub.f32 %v600, %v729
        %v792 = vsub.f32 %v605, %v732
        %v793 = vsub.f32 %v610, %v735
        %v794 = vsub.f32 %v615, %v738
        %v795 = vsub.f32 %v620, %v741
        %v796 = vsub.f32 %v625, %v744
        %v797 = vsub.f32 %v630, %v747
        %v798 = vsub.f32 %v635, %v750
        %v799 = vsub.f32 %v640, %v753
        %v800 = vsub.f32 %v645, %v756
        %v801 = vsub.f32 %v650, %v759
        %v802 = vsub.f32 %v655, %v762
        %v803 = vsub.f32 %v660, %v765
        %v804 = vsub.f32 %v665, %v768
        %v805 = vsub.f32 %v670, %v771
        %v806 = vsub.f32 %v675, %v774
        %v807 = vmul.f32 %v775, 1.442695
        %v808 = vpow.pop %v807
        %v809 = vmul.f32 %v776, 1.442695
        %v810 = vpow.pop %v809
        %v811 = vmul.f32 %v777, 1.442695
        %v812 = vpow.pop %v811
        %v813 = vmul.f32 %v778, 1.442695
        %v814 = vpow.pop %v813
        %v815 = vmul.f32 %v779, 1.442695
        %v816 = vpow.pop %v815
        %v817 = vmul.f32 %v780, 1.442695
        %v818 = vpow.pop %v817
        %v819 = vmul.f32 %v781, 1.442695
        %v820 = vpow.pop %v819
        %v821 = vmul.f32 %v782, 1.442695
        %v822 = vpow.pop %v821
        %v823 = vmul.f32 %v783, 1.442695
        %v824 = vpow.pop %v823
        %v825 = vmul.f32 %v784, 1.442695
        %v826 = vpow.pop %v825
        %v827 = vmul.f32 %v785, 1.442695
        %v828 = vpow.pop %v827
        %v829 = vmul.f32 %v786, 1.442695
        %v830 = vpow.pop %v829
        %v831 = vmul.f32 %v787, 1.442695
        %v832 = vpow.pop %v831
        %v833 = vmul.f32 %v788, 1.442695
        %v834 = vpow.pop %v833
        %v835 = vmul.f32 %v789, 1.442695
        %v836 = vpow.pop %v835
        %v837 = vmul.f32 %v790, 1.442695
        %v838 = vpow.pop %v837
        %v839 = vmul.f32 %v791, 1.442695
        %v840 = vpow.pop %v839
        %v841 = vmul.f32 %v792, 1.442695
        %v842 = vpow.pop %v841
        %v843 = vmul.f32 %v793, 1.442695
        %v844 = vpow.pop %v843
        %v845 = vmul.f32 %v794, 1.442695
        %v846 = vpow.pop %v845
        %v847 = vmul.f32 %v795, 1.442695
        %v848 = vpow.pop %v847
        %v849 = vmul.f32 %v796, 1.442695
        %v850 = vpow.pop %v849
        %v851 = vmul.f32 %v797, 1.442695
        %v852 = vpow.pop %v851
        %v853 = vmul.f32 %v798, 1.442695
        %v854 = vpow.pop %v853
        %v855 = vmul.f32 %v799, 1.442695
        %v856 = vpow.pop %v855
        %v857 = vmul.f32 %v800, 1.442695
        %v858 = vpow.pop %v857
        %v859 = vmul.f32 %v801, 1.442695
        %v860 = vpow.pop %v859
        %v861 = vmul.f32 %v802, 1.442695
        %v862 = vpow.pop %v861
        %v863 = vmul.f32 %v803, 1.442695
        %v864 = vpow.pop %v863
        %v865 = vmul.f32 %v804, 1.442695
        %v866 = vpow.pop %v865
        %v867 = vmul.f32 %v805, 1.442695
        %v868 = vpow.pop %v867
        %v869 = vmul.f32 %v806, 1.442695
        %v870 = vpow.pop %v869
        %v871 = vsel %vm678, %v808, 0.0
        %872 = vadd.xlane.f32.xlu0 %v871
        %v873 = vpop.xlane.xlu0 %872
        %v874 = vsel %vm678, %v810, 0.0
        %875 = vadd.xlane.f32.xlu0 %v874
        %v876 = vpop.xlane.xlu0 %875
        %v877 = vsel %vm678, %v812, 0.0
        %878 = vadd.xlane.f32.xlu0 %v877
        %v879 = vpop.xlane.xlu0 %878
        %v880 = vsel %vm678, %v814, 0.0
        %881 = vadd.xlane.f32.xlu0 %v880
        %v882 = vpop.xlane.xlu0 %881
        %v883 = vsel %vm678, %v816, 0.0
        %884 = vadd.xlane.f32.xlu0 %v883
        %v885 = vpop.xlane.xlu0 %884
        %v886 = vsel %vm678, %v818, 0.0
        %887 = vadd.xlane.f32.xlu0 %v886
        %v888 = vpop.xlane.xlu0 %887
        %v889 = vsel %vm678, %v820, 0.0
        %890 = vadd.xlane.f32.xlu0 %v889
        %v891 = vpop.xlane.xlu0 %890
        %v892 = vsel %vm678, %v822, 0.0
        %893 = vadd.xlane.f32.xlu0 %v892
        %v894 = vpop.xlane.xlu0 %893
        %v895 = vsel %vm678, %v824, 0.0
        %896 = vadd.xlane.f32.xlu0 %v895
        %v897 = vpop.xlane.xlu0 %896
        %v898 = vsel %vm678, %v826, 0.0
        %899 = vadd.xlane.f32.xlu0 %v898
        %v900 = vpop.xlane.xlu0 %899
        %v901 = vsel %vm678, %v828, 0.0
        %902 = vadd.xlane.f32.xlu0 %v901
        %v903 = vpop.xlane.xlu0 %902
        %v904 = vsel %vm678, %v830, 0.0
        %905 = vadd.xlane.f32.xlu0 %v904
        %v906 = vpop.xlane.xlu0 %905
        %v907 = vsel %vm678, %v832, 0.0
        %908 = vadd.xlane.f32.xlu0 %v907
        %v909 = vpop.xlane.xlu0 %908
        %v910 = vsel %vm678, %v834, 0.0
        %911 = vadd.xlane.f32.xlu0 %v910
        %v912 = vpop.xlane.xlu0 %911
        %v913 = vsel %vm678, %v836, 0.0
        %914 = vadd.xlane.f32.xlu0 %v913
        %v915 = vpop.xlane.xlu0 %914
        %v916 = vsel %vm678, %v838, 0.0
        %917 = vadd.xlane.f32.xlu0 %v916
        %v918 = vpop.xlane.xlu0 %917
        %v919 = vsel %vm678, %v840, 0.0
        %920 = vadd.xlane.f32.xlu0 %v919
        %v921 = vpop.xlane.xlu0 %920
        %v922 = vsel %vm678, %v842, 0.0
        %923 = vadd.xlane.f32.xlu0 %v922
        %v924 = vpop.xlane.xlu0 %923
        %v925 = vsel %vm678, %v844, 0.0
        %926 = vadd.xlane.f32.xlu0 %v925
        %v927 = vpop.xlane.xlu0 %926
        %v928 = vsel %vm678, %v846, 0.0
        %929 = vadd.xlane.f32.xlu0 %v928
        %v930 = vpop.xlane.xlu0 %929
        %v931 = vsel %vm678, %v848, 0.0
        %932 = vadd.xlane.f32.xlu0 %v931
        %v933 = vpop.xlane.xlu0 %932
        %v934 = vsel %vm678, %v850, 0.0
        %935 = vadd.xlane.f32.xlu0 %v934
        %v936 = vpop.xlane.xlu0 %935
        %v937 = vsel %vm678, %v852, 0.0
        %938 = vadd.xlane.f32.xlu0 %v937
        %v939 = vpop.xlane.xlu0 %938
        %v940 = vsel %vm678, %v854, 0.0
        %941 = vadd.xlane.f32.xlu0 %v940
        %v942 = vpop.xlane.xlu0 %941
        %v943 = vsel %vm678, %v856, 0.0
        %944 = vadd.xlane.f32.xlu0 %v943
        %v945 = vpop.xlane.xlu0 %944
        %v946 = vsel %vm678, %v858, 0.0
        %947 = vadd.xlane.f32.xlu0 %v946
        %v948 = vpop.xlane.xlu0 %947
        %v949 = vsel %vm678, %v860, 0.0
        %950 = vadd.xlane.f32.xlu0 %v949
        %v951 = vpop.xlane.xlu0 %950
        %v952 = vsel %vm678, %v862, 0.0
        %953 = vadd.xlane.f32.xlu0 %v952
        %v954 = vpop.xlane.xlu0 %953
        %v955 = vsel %vm678, %v864, 0.0
        %956 = vadd.xlane.f32.xlu0 %v955
        %v957 = vpop.xlane.xlu0 %956
        %v958 = vsel %vm678, %v866, 0.0
        %959 = vadd.xlane.f32.xlu0 %v958
        %v960 = vpop.xlane.xlu0 %959
        %v961 = vsel %vm678, %v868, 0.0
        %962 = vadd.xlane.f32.xlu0 %v961
        %v963 = vpop.xlane.xlu0 %962
        %v964 = vsel %vm678, %v870, 0.0
        %965 = vadd.xlane.f32.xlu0 %v964
        %v966 = vpop.xlane.xlu0 %965
        %v967 = vrcp.pop %v873
        %v968 = vmul.f32 %v808, %v967
        %v969 = vrcp.pop %v876
        %v970 = vmul.f32 %v810, %v969
        %v971 = vrcp.pop %v879
        %v972 = vmul.f32 %v812, %v971
        %v973 = vrcp.pop %v882
        %v974 = vmul.f32 %v814, %v973
        %v975 = vrcp.pop %v885
        %v976 = vmul.f32 %v816, %v975
        %v977 = vrcp.pop %v888
        %v978 = vmul.f32 %v818, %v977
        %v979 = vrcp.pop %v891
        %v980 = vmul.f32 %v820, %v979
        %v981 = vrcp.pop %v894
        %v982 = vmul.f32 %v822, %v981
        %v983 = vrcp.pop %v897
        %v984 = vmul.f32 %v824, %v983
        %v985 = vrcp.pop %v900
        %v986 = vmul.f32 %v826, %v985
        %v987 = vrcp.pop %v903
        %v988 = vmul.f32 %v828, %v987
        %v989 = vrcp.pop %v906
        %v990 = vmul.f32 %v830, %v989
        %v991 = vrcp.pop %v909
        %v992 = vmul.f32 %v832, %v991
        %v993 = vrcp.pop %v912
        %v994 = vmul.f32 %v834, %v993
        %v995 = vrcp.pop %v915
        %v996 = vmul.f32 %v836, %v995
        %v997 = vrcp.pop %v918
        %v998 = vmul.f32 %v838, %v997
        %v999 = vrcp.pop %v921
        %v1000 = vmul.f32 %v840, %v999
        %v1001 = vrcp.pop %v924
        %v1002 = vmul.f32 %v842, %v1001
        %v1003 = vrcp.pop %v927
        %v1004 = vmul.f32 %v844, %v1003
        %v1005 = vrcp.pop %v930
        %v1006 = vmul.f32 %v846, %v1005
        %v1007 = vrcp.pop %v933
        %v1008 = vmul.f32 %v848, %v1007
        %v1009 = vrcp.pop %v936
        %v1010 = vmul.f32 %v850, %v1009
        %v1011 = vrcp.pop %v939
        %v1012 = vmul.f32 %v852, %v1011
        %v1013 = vrcp.pop %v942
        %v1014 = vmul.f32 %v854, %v1013
        %v1015 = vrcp.pop %v945
        %v1016 = vmul.f32 %v856, %v1015
        %v1017 = vrcp.pop %v948
        %v1018 = vmul.f32 %v858, %v1017
        %v1019 = vrcp.pop %v951
        %v1020 = vmul.f32 %v860, %v1019
        %v1021 = vrcp.pop %v954
        %v1022 = vmul.f32 %v862, %v1021
        %v1023 = vrcp.pop %v957
        %v1024 = vmul.f32 %v864, %v1023
        %v1025 = vrcp.pop %v960
        %v1026 = vmul.f32 %v866, %v1025
        %v1027 = vrcp.pop %v963
        %v1028 = vmul.f32 %v868, %v1027
        %v1029 = vrcp.pop %v966
        %v1030 = vmul.f32 %v870, %v1029
        %1031 = vmatprep.subr.mxu0 0.0
        %1032 = vmatpush1.msra.mxu0 0.0
        %1033 = vmatprep.subr.mxu0 0.0
        %1034 = vmatpush1.msra.mxu0 0.0
        %1035 = vmatprep.subr.mxu0 0.0
        %1036 = vmatpush1.msra.mxu0 0.0
        %1037 = vmatprep.subr.mxu0 0.0
        %1038 = vmatpush1.msra.mxu0 0.0
        %1039 = vmatprep.subr.mxu0 0.0
        %1040 = vmatpush1.msra.mxu0 0.0
        %1041 = vmatprep.subr.mxu0 0.0
        %1042 = vmatpush1.msra.mxu0 0.0
        %1043 = vmatprep.subr.mxu0 0.0
        %1044 = vmatpush1.msra.mxu0 0.0
        %1045 = vmatprep.subr.mxu0 0.0
        %1046 = vmatpush1.msra.mxu0 0.0
        %1047 = vmatprep.subr.mxu0 0.0
        %1048 = vmatpush1.msra.mxu0 0.0
        %1049 = vmatprep.subr.mxu0 0.0
        %1050 = vmatpush1.msra.mxu0 0.0
        %1051 = vmatprep.subr.mxu0 0.0
        %1052 = vmatpush1.msra.mxu0 0.0
        %1053 = vmatprep.subr.mxu0 0.0
        %1054 = vmatpush1.msra.mxu0 0.0
        %1055 = vmatprep.subr.mxu0 0.0
        %1056 = vmatpush1.msra.mxu0 %v315
        %1057 = vmatprep.subr.mxu0 0.0
        %1058 = vmatpush1.msra.mxu0 %v314
        %1059 = vmatprep.subr.mxu0 0.0
        %1060 = vmatpush1.msra.mxu0 %v313
        %1061 = vmatprep.subr.mxu0 0.0
        %1062 = vmatpush1.msra.mxu0 %v312
        %1063 = vmatprep.subr.mxu0 0.0
        %1064 = vmatpush2.msra.mxu0 0.0
        %1065 = vmatprep.subr.mxu0 0.0
        %1066 = vmatpush2.msra.mxu0 0.0
        %1067 = vmatprep.subr.mxu0 0.0
        %1068 = vmatpush2.msra.mxu0 0.0
        %1069 = vmatprep.subr.mxu0 0.0
        %1070 = vmatpush2.msra.mxu0 0.0
        %1071 = vmatprep.subr.mxu0 0.0
        %1072 = vmatpush2.msra.mxu0 0.0
        %1073 = vmatprep.subr.mxu0 0.0
        %1074 = vmatpush2.msra.mxu0 0.0
        %1075 = vmatprep.subr.mxu0 0.0
        %1076 = vmatpush2.msra.mxu0 0.0
        %1077 = vmatprep.subr.mxu0 0.0
        %1078 = vmatpush2.msra.mxu0 0.0
        %1079 = vmatprep.subr.mxu0 0.0
        %1080 = vmatpush2.msra.mxu0 0.0
        %1081 = vmatprep.subr.mxu0 0.0
        %1082 = vmatpush2.msra.mxu0 0.0
        %1083 = vmatprep.subr.mxu0 0.0
        %1084 = vmatpush2.msra.mxu0 0.0
        %1085 = vmatprep.subr.mxu0 0.0
        %1086 = vmatpush2.msra.mxu0 0.0
        %1087 = vmatprep.subr.mxu0 0.0
        %1088 = vmatpush2.msra.mxu0 0.0
        %1089 = vmatprep.subr.mxu0 0.0
        %1090 = vmatpush2.msra.mxu0 0.0
        %1091 = vmatprep.subr.mxu0 0.0
        %1092 = vmatpush2.msra.mxu0 0.0
        %1093 = vmatprep.subr.mxu0 0.0
        %1094 = vmatpush2.msra.mxu0 0.0
        %1095 = vmatprep.mubr.f32.mxu0 0.0
        %1096 = vmatmul.mubr.f32.gmra.mxu0 %v451
        %v1097 = vpop.f32.mrf.mxu0
        %v1098 = vadd.f32 0.0, %v1097
        %v1099 = vpop.f32.mrf.mxu0
        %1100 = vdwg.mxu0
        %v1102 = vsel %vm678, %v968, 0
        %v1105 = vsel %vm678, %v970, 0
        %v1108 = vsel %vm678, %v972, 0
        %v1111 = vsel %vm678, %v974, 0
        %1113 = vmatprep.subr.mxu0 0.0
        %1114 = vmatpush1.msra.mxu0 0.0
        %1115 = vmatprep.subr.mxu0 0.0
        %1116 = vmatpush1.msra.mxu0 0.0
        %1117 = vmatprep.subr.mxu0 0.0
        %1118 = vmatpush1.msra.mxu0 0.0
        %1119 = vmatprep.subr.mxu0 0.0
        %1120 = vmatpush1.msra.mxu0 0.0
        %1121 = vmatprep.subr.mxu0 0.0
        %1122 = vmatpush1.msra.mxu0 0.0
        %1123 = vmatprep.subr.mxu0 0.0
        %1124 = vmatpush1.msra.mxu0 0.0
        %1125 = vmatprep.subr.mxu0 0.0
        %1126 = vmatpush1.msra.mxu0 0.0
        %1127 = vmatprep.subr.mxu0 0.0
        %1128 = vmatpush1.msra.mxu0 0.0
        %1129 = vmatprep.subr.mxu0 0.0
        %1130 = vmatpush1.msra.mxu0 0.0
        %1131 = vmatprep.subr.mxu0 0.0
        %1132 = vmatpush1.msra.mxu0 0.0
        %1133 = vmatprep.subr.mxu0 0.0
        %1134 = vmatpush1.msra.mxu0 0.0
        %1135 = vmatprep.subr.mxu0 0.0
        %1136 = vmatpush1.msra.mxu0 0.0
        %1137 = vmatprep.subr.mxu0 0.0
        %1138 = vmatpush1.msra.mxu0 0.0
        %1139 = vmatprep.subr.mxu0 0.0
        %1140 = vmatpush1.msra.mxu0 0.0
        %1141 = vmatprep.subr.mxu0 0.0
        %1142 = vmatpush1.msra.mxu0 0.0
        %1143 = vmatprep.subr.mxu0 0.0
        %1144 = vmatpush1.msra.mxu0 %v1098
        %1145 = vmatprep.subr.mxu0 0.0
        %1146 = vmatpush2.msra.mxu0 0.0
        %1147 = vmatprep.subr.mxu0 0.0
        %1148 = vmatpush2.msra.mxu0 0.0
        %1149 = vmatprep.subr.mxu0 0.0
        %1150 = vmatpush2.msra.mxu0 0.0
        %1151 = vmatprep.subr.mxu0 0.0
        %1152 = vmatpush2.msra.mxu0 0.0
        %1153 = vmatprep.subr.mxu0 0.0
        %1154 = vmatpush2.msra.mxu0 0.0
        %1155 = vmatprep.subr.mxu0 0.0
        %1156 = vmatpush2.msra.mxu0 0.0
        %1157 = vmatprep.subr.mxu0 0.0
        %1158 = vmatpush2.msra.mxu0 0.0
        %1159 = vmatprep.subr.mxu0 0.0
        %1160 = vmatpush2.msra.mxu0 0.0
        %1161 = vmatprep.subr.mxu0 0.0
        %1162 = vmatpush2.msra.mxu0 0.0
        %1163 = vmatprep.subr.mxu0 0.0
        %1164 = vmatpush2.msra.mxu0 0.0
        %1165 = vmatprep.subr.mxu0 0.0
        %1166 = vmatpush2.msra.mxu0 0.0
        %1167 = vmatprep.subr.mxu0 0.0
        %1168 = vmatpush2.msra.mxu0 0.0
        %1169 = vmatprep.subr.mxu0 0.0
        %1170 = vmatpush2.msra.mxu0 0.0
        %1171 = vmatprep.subr.mxu0 0.0
        %1172 = vmatpush2.msra.mxu0 0.0
        %1173 = vmatprep.subr.mxu0 0.0
        %1174 = vmatpush2.msra.mxu0 0.0
        %1175 = vmatprep.subr.mxu0 0.0
        %1176 = vmatpush2.msra.mxu0 0.0
        %1177 = vmatprep.mubr.f32.mxu0 0.0
        %1178 = vmatmul.mubr.f32.gmra.mxu0 %v1102
        %v1179 = vpop.f32.mrf.mxu0
        %v1180 = vadd.f32 0.0, %v1179
        %v1181 = vpop.f32.mrf.mxu0
        %1182 = vmatprep.mubr.f32.mxu0 0.0
        %1183 = vmatmul.mubr.f32.gmra.mxu0 %v1105
        %v1184 = vpop.f32.mrf.mxu0
        %v1185 = vadd.f32 0.0, %v1184
        %v1186 = vpop.f32.mrf.mxu0
        %1187 = vmatprep.mubr.f32.mxu0 0.0
        %1188 = vmatmul.mubr.f32.gmra.mxu0 %v1108
        %v1189 = vpop.f32.mrf.mxu0
        %v1190 = vadd.f32 0.0, %v1189
        %v1191 = vpop.f32.mrf.mxu0
        %1192 = vmatprep.mubr.f32.mxu0 0.0
        %1193 = vmatmul.mubr.f32.gmra.mxu0 %v1111
        %v1194 = vpop.f32.mrf.mxu0
        %v1195 = vadd.f32 0.0, %v1194
        %v1196 = vpop.f32.mrf.mxu0
        %1197 = vdwg.mxu0
        %1199 = vrot.lane.b32.xlu0 %v1098, 120
        %v1200 = vpop.permute.xlu0 %1199
        %v1203 = vsel %vm678, %v976, 0
        %v1206 = vsel %vm678, %v978, 0
        %v1209 = vsel %vm678, %v980, 0
        %v1212 = vsel %vm678, %v982, 0
        %1214 = vmatprep.subr.mxu0 0.0
        %1215 = vmatpush1.msra.mxu0 0.0
        %1216 = vmatprep.subr.mxu0 0.0
        %1217 = vmatpush1.msra.mxu0 0.0
        %1218 = vmatprep.subr.mxu0 0.0
        %1219 = vmatpush1.msra.mxu0 0.0
        %1220 = vmatprep.subr.mxu0 0.0
        %1221 = vmatpush1.msra.mxu0 0.0
        %1222 = vmatprep.subr.mxu0 0.0
        %1223 = vmatpush1.msra.mxu0 0.0
        %1224 = vmatprep.subr.mxu0 0.0
        %1225 = vmatpush1.msra.mxu0 0.0
        %1226 = vmatprep.subr.mxu0 0.0
        %1227 = vmatpush1.msra.mxu0 0.0
        %1228 = vmatprep.subr.mxu0 0.0
        %1229 = vmatpush1.msra.mxu0 0.0
        %1230 = vmatprep.subr.mxu0 0.0
        %1231 = vmatpush1.msra.mxu0 0.0
        %1232 = vmatprep.subr.mxu0 0.0
        %1233 = vmatpush1.msra.mxu0 0.0
        %1234 = vmatprep.subr.mxu0 0.0
        %1235 = vmatpush1.msra.mxu0 0.0
        %1236 = vmatprep.subr.mxu0 0.0
        %1237 = vmatpush1.msra.mxu0 0.0
        %1238 = vmatprep.subr.mxu0 0.0
        %1239 = vmatpush1.msra.mxu0 0.0
        %1240 = vmatprep.subr.mxu0 0.0
        %1241 = vmatpush1.msra.mxu0 0.0
        %1242 = vmatprep.subr.mxu0 0.0
        %1243 = vmatpush1.msra.mxu0 0.0
        %1244 = vmatprep.subr.mxu0 0.0
        %1245 = vmatpush1.msra.mxu0 %v1200
        %1246 = vmatprep.subr.mxu0 0.0
        %1247 = vmatpush2.msra.mxu0 0.0
        %1248 = vmatprep.subr.mxu0 0.0
        %1249 = vmatpush2.msra.mxu0 0.0
        %1250 = vmatprep.subr.mxu0 0.0
        %1251 = vmatpush2.msra.mxu0 0.0
        %1252 = vmatprep.subr.mxu0 0.0
        %1253 = vmatpush2.msra.mxu0 0.0
        %1254 = vmatprep.subr.mxu0 0.0
        %1255 = vmatpush2.msra.mxu0 0.0
        %1256 = vmatprep.subr.mxu0 0.0
        %1257 = vmatpush2.msra.mxu0 0.0
        %1258 = vmatprep.subr.mxu0 0.0
        %1259 = vmatpush2.msra.mxu0 0.0
        %1260 = vmatprep.subr.mxu0 0.0
        %1261 = vmatpush2.msra.mxu0 0.0
        %1262 = vmatprep.subr.mxu0 0.0
        %1263 = vmatpush2.msra.mxu0 0.0
        %1264 = vmatprep.subr.mxu0 0.0
        %1265 = vmatpush2.msra.mxu0 0.0
        %1266 = vmatprep.subr.mxu0 0.0
        %1267 = vmatpush2.msra.mxu0 0.0
        %1268 = vmatprep.subr.mxu0 0.0
        %1269 = vmatpush2.msra.mxu0 0.0
        %1270 = vmatprep.subr.mxu0 0.0
        %1271 = vmatpush2.msra.mxu0 0.0
        %1272 = vmatprep.subr.mxu0 0.0
        %1273 = vmatpush2.msra.mxu0 0.0
        %1274 = vmatprep.subr.mxu0 0.0
        %1275 = vmatpush2.msra.mxu0 0.0
        %1276 = vmatprep.subr.mxu0 0.0
        %1277 = vmatpush2.msra.mxu0 0.0
        %1278 = vmatprep.mubr.f32.mxu0 0.0
        %1279 = vmatmul.mubr.f32.gmra.mxu0 %v1203
        %v1280 = vpop.f32.mrf.mxu0
        %v1281 = vadd.f32 0.0, %v1280
        %v1282 = vpop.f32.mrf.mxu0
        %1283 = vmatprep.mubr.f32.mxu0 0.0
        %1284 = vmatmul.mubr.f32.gmra.mxu0 %v1206
        %v1285 = vpop.f32.mrf.mxu0
        %v1286 = vadd.f32 0.0, %v1285
        %v1287 = vpop.f32.mrf.mxu0
        %1288 = vmatprep.mubr.f32.mxu0 0.0
        %1289 = vmatmul.mubr.f32.gmra.mxu0 %v1209
        %v1290 = vpop.f32.mrf.mxu0
        %v1291 = vadd.f32 0.0, %v1290
        %v1292 = vpop.f32.mrf.mxu0
        %1293 = vmatprep.mubr.f32.mxu0 0.0
        %1294 = vmatmul.mubr.f32.gmra.mxu0 %v1212
        %v1295 = vpop.f32.mrf.mxu0
        %v1296 = vadd.f32 0.0, %v1295
        %v1297 = vpop.f32.mrf.mxu0
        %1298 = vdwg.mxu0
        %1299 = vrot.lane.b32.xlu0 %v1098, 112
        %v1300 = vpop.permute.xlu0 %1299
        %v1303 = vsel %vm678, %v984, 0
        %v1306 = vsel %vm678, %v986, 0
        %v1309 = vsel %vm678, %v988, 0
        %v1312 = vsel %vm678, %v990, 0
        %1314 = vmatprep.subr.mxu0 0.0
        %1315 = vmatpush1.msra.mxu0 0.0
        %1316 = vmatprep.subr.mxu0 0.0
        %1317 = vmatpush1.msra.mxu0 0.0
        %1318 = vmatprep.subr.mxu0 0.0
        %1319 = vmatpush1.msra.mxu0 0.0
        %1320 = vmatprep.subr.mxu0 0.0
        %1321 = vmatpush1.msra.mxu0 0.0
        %1322 = vmatprep.subr.mxu0 0.0
        %1323 = vmatpush1.msra.mxu0 0.0
        %1324 = vmatprep.subr.mxu0 0.0
        %1325 = vmatpush1.msra.mxu0 0.0
        %1326 = vmatprep.subr.mxu0 0.0
        %1327 = vmatpush1.msra.mxu0 0.0
        %1328 = vmatprep.subr.mxu0 0.0
        %1329 = vmatpush1.msra.mxu0 0.0
        %1330 = vmatprep.subr.mxu0 0.0
        %1331 = vmatpush1.msra.mxu0 0.0
        %1332 = vmatprep.subr.mxu0 0.0
        %1333 = vmatpush1.msra.mxu0 0.0
        %1334 = vmatprep.subr.mxu0 0.0
        %1335 = vmatpush1.msra.mxu0 0.0
        %1336 = vmatprep.subr.mxu0 0.0
        %1337 = vmatpush1.msra.mxu0 0.0
        %1338 = vmatprep.subr.mxu0 0.0
        %1339 = vmatpush1.msra.mxu0 0.0
        %1340 = vmatprep.subr.mxu0 0.0
        %1341 = vmatpush1.msra.mxu0 0.0
        %1342 = vmatprep.subr.mxu0 0.0
        %1343 = vmatpush1.msra.mxu0 0.0
        %1344 = vmatprep.subr.mxu0 0.0
        %1345 = vmatpush1.msra.mxu0 %v1300
        %1346 = vmatprep.subr.mxu0 0.0
        %1347 = vmatpush2.msra.mxu0 0.0
        %1348 = vmatprep.subr.mxu0 0.0
        %1349 = vmatpush2.msra.mxu0 0.0
        %1350 = vmatprep.subr.mxu0 0.0
        %1351 = vmatpush2.msra.mxu0 0.0
        %1352 = vmatprep.subr.mxu0 0.0
        %1353 = vmatpush2.msra.mxu0 0.0
        %1354 = vmatprep.subr.mxu0 0.0
        %1355 = vmatpush2.msra.mxu0 0.0
        %1356 = vmatprep.subr.mxu0 0.0
        %1357 = vmatpush2.msra.mxu0 0.0
        %1358 = vmatprep.subr.mxu0 0.0
        %1359 = vmatpush2.msra.mxu0 0.0
        %1360 = vmatprep.subr.mxu0 0.0
        %1361 = vmatpush2.msra.mxu0 0.0
        %1362 = vmatprep.subr.mxu0 0.0
        %1363 = vmatpush2.msra.mxu0 0.0
        %1364 = vmatprep.subr.mxu0 0.0
        %1365 = vmatpush2.msra.mxu0 0.0
        %1366 = vmatprep.subr.mxu0 0.0
        %1367 = vmatpush2.msra.mxu0 0.0
        %1368 = vmatprep.subr.mxu0 0.0
        %1369 = vmatpush2.msra.mxu0 0.0
        %1370 = vmatprep.subr.mxu0 0.0
        %1371 = vmatpush2.msra.mxu0 0.0
        %1372 = vmatprep.subr.mxu0 0.0
        %1373 = vmatpush2.msra.mxu0 0.0
        %1374 = vmatprep.subr.mxu0 0.0
        %1375 = vmatpush2.msra.mxu0 0.0
        %1376 = vmatprep.subr.mxu0 0.0
        %1377 = vmatpush2.msra.mxu0 0.0
        %1378 = vmatprep.mubr.f32.mxu0 0.0
        %1379 = vmatmul.mubr.f32.gmra.mxu0 %v1303
        %v1380 = vpop.f32.mrf.mxu0
        %v1381 = vadd.f32 0.0, %v1380
        %v1382 = vpop.f32.mrf.mxu0
        %1383 = vmatprep.mubr.f32.mxu0 0.0
        %1384 = vmatmul.mubr.f32.gmra.mxu0 %v1306
        %v1385 = vpop.f32.mrf.mxu0
        %v1386 = vadd.f32 0.0, %v1385
        %v1387 = vpop.f32.mrf.mxu0
        %1388 = vmatprep.mubr.f32.mxu0 0.0
        %1389 = vmatmul.mubr.f32.gmra.mxu0 %v1309
        %v1390 = vpop.f32.mrf.mxu0
        %v1391 = vadd.f32 0.0, %v1390
        %v1392 = vpop.f32.mrf.mxu0
        %1393 = vmatprep.mubr.f32.mxu0 0.0
        %1394 = vmatmul.mubr.f32.gmra.mxu0 %v1312
        %v1395 = vpop.f32.mrf.mxu0
        %v1396 = vadd.f32 0.0, %v1395
        %v1397 = vpop.f32.mrf.mxu0
        %1398 = vdwg.mxu0
        %1399 = vrot.lane.b32.xlu0 %v1098, 104
        %v1400 = vpop.permute.xlu0 %1399
        %v1403 = vsel %vm678, %v992, 0
        %v1406 = vsel %vm678, %v994, 0
        %v1409 = vsel %vm678, %v996, 0
        %v1412 = vsel %vm678, %v998, 0
        %1414 = vmatprep.subr.mxu0 0.0
        %1415 = vmatpush1.msra.mxu0 0.0
        %1416 = vmatprep.subr.mxu0 0.0
        %1417 = vmatpush1.msra.mxu0 0.0
        %1418 = vmatprep.subr.mxu0 0.0
        %1419 = vmatpush1.msra.mxu0 0.0
        %1420 = vmatprep.subr.mxu0 0.0
        %1421 = vmatpush1.msra.mxu0 0.0
        %1422 = vmatprep.subr.mxu0 0.0
        %1423 = vmatpush1.msra.mxu0 0.0
        %1424 = vmatprep.subr.mxu0 0.0
        %1425 = vmatpush1.msra.mxu0 0.0
        %1426 = vmatprep.subr.mxu0 0.0
        %1427 = vmatpush1.msra.mxu0 0.0
        %1428 = vmatprep.subr.mxu0 0.0
        %1429 = vmatpush1.msra.mxu0 0.0
        %1430 = vmatprep.subr.mxu0 0.0
        %1431 = vmatpush1.msra.mxu0 0.0
        %1432 = vmatprep.subr.mxu0 0.0
        %1433 = vmatpush1.msra.mxu0 0.0
        %1434 = vmatprep.subr.mxu0 0.0
        %1435 = vmatpush1.msra.mxu0 0.0
        %1436 = vmatprep.subr.mxu0 0.0
        %1437 = vmatpush1.msra.mxu0 0.0
        %1438 = vmatprep.subr.mxu0 0.0
        %1439 = vmatpush1.msra.mxu0 0.0
        %1440 = vmatprep.subr.mxu0 0.0
        %1441 = vmatpush1.msra.mxu0 0.0
        %1442 = vmatprep.subr.mxu0 0.0
        %1443 = vmatpush1.msra.mxu0 0.0
        %1444 = vmatprep.subr.mxu0 0.0
        %1445 = vmatpush1.msra.mxu0 %v1400
        %1446 = vmatprep.subr.mxu0 0.0
        %1447 = vmatpush2.msra.mxu0 0.0
        %1448 = vmatprep.subr.mxu0 0.0
        %1449 = vmatpush2.msra.mxu0 0.0
        %1450 = vmatprep.subr.mxu0 0.0
        %1451 = vmatpush2.msra.mxu0 0.0
        %1452 = vmatprep.subr.mxu0 0.0
        %1453 = vmatpush2.msra.mxu0 0.0
        %1454 = vmatprep.subr.mxu0 0.0
        %1455 = vmatpush2.msra.mxu0 0.0
        %1456 = vmatprep.subr.mxu0 0.0
        %1457 = vmatpush2.msra.mxu0 0.0
        %1458 = vmatprep.subr.mxu0 0.0
        %1459 = vmatpush2.msra.mxu0 0.0
        %1460 = vmatprep.subr.mxu0 0.0
        %1461 = vmatpush2.msra.mxu0 0.0
        %1462 = vmatprep.subr.mxu0 0.0
        %1463 = vmatpush2.msra.mxu0 0.0
        %1464 = vmatprep.subr.mxu0 0.0
        %1465 = vmatpush2.msra.mxu0 0.0
        %1466 = vmatprep.subr.mxu0 0.0
        %1467 = vmatpush2.msra.mxu0 0.0
        %1468 = vmatprep.subr.mxu0 0.0
        %1469 = vmatpush2.msra.mxu0 0.0
        %1470 = vmatprep.subr.mxu0 0.0
        %1471 = vmatpush2.msra.mxu0 0.0
        %1472 = vmatprep.subr.mxu0 0.0
        %1473 = vmatpush2.msra.mxu0 0.0
        %1474 = vmatprep.subr.mxu0 0.0
        %1475 = vmatpush2.msra.mxu0 0.0
        %1476 = vmatprep.subr.mxu0 0.0
        %1477 = vmatpush2.msra.mxu0 0.0
        %1478 = vmatprep.mubr.f32.mxu0 0.0
        %1479 = vmatmul.mubr.f32.gmra.mxu0 %v1403
        %v1480 = vpop.f32.mrf.mxu0
        %v1481 = vadd.f32 0.0, %v1480
        %v1482 = vpop.f32.mrf.mxu0
        %1483 = vmatprep.mubr.f32.mxu0 0.0
        %1484 = vmatmul.mubr.f32.gmra.mxu0 %v1406
        %v1485 = vpop.f32.mrf.mxu0
        %v1486 = vadd.f32 0.0, %v1485
        %v1487 = vpop.f32.mrf.mxu0
        %1488 = vmatprep.mubr.f32.mxu0 0.0
        %1489 = vmatmul.mubr.f32.gmra.mxu0 %v1409
        %v1490 = vpop.f32.mrf.mxu0
        %v1491 = vadd.f32 0.0, %v1490
        %v1492 = vpop.f32.mrf.mxu0
        %1493 = vmatprep.mubr.f32.mxu0 0.0
        %1494 = vmatmul.mubr.f32.gmra.mxu0 %v1412
        %v1495 = vpop.f32.mrf.mxu0
        %v1496 = vadd.f32 0.0, %v1495
        %v1497 = vpop.f32.mrf.mxu0
        %1498 = vdwg.mxu0
        %1499 = vrot.lane.b32.xlu0 %v1098, 96
        %v1500 = vpop.permute.xlu0 %1499
        %v1503 = vsel %vm678, %v1000, 0
        %v1506 = vsel %vm678, %v1002, 0
        %v1509 = vsel %vm678, %v1004, 0
        %v1512 = vsel %vm678, %v1006, 0
        %1514 = vmatprep.subr.mxu0 0.0
        %1515 = vmatpush1.msra.mxu0 0.0
        %1516 = vmatprep.subr.mxu0 0.0
        %1517 = vmatpush1.msra.mxu0 0.0
        %1518 = vmatprep.subr.mxu0 0.0
        %1519 = vmatpush1.msra.mxu0 0.0
        %1520 = vmatprep.subr.mxu0 0.0
        %1521 = vmatpush1.msra.mxu0 0.0
        %1522 = vmatprep.subr.mxu0 0.0
        %1523 = vmatpush1.msra.mxu0 0.0
        %1524 = vmatprep.subr.mxu0 0.0
        %1525 = vmatpush1.msra.mxu0 0.0
        %1526 = vmatprep.subr.mxu0 0.0
        %1527 = vmatpush1.msra.mxu0 0.0
        %1528 = vmatprep.subr.mxu0 0.0
        %1529 = vmatpush1.msra.mxu0 0.0
        %1530 = vmatprep.subr.mxu0 0.0
        %1531 = vmatpush1.msra.mxu0 0.0
        %1532 = vmatprep.subr.mxu0 0.0
        %1533 = vmatpush1.msra.mxu0 0.0
        %1534 = vmatprep.subr.mxu0 0.0
        %1535 = vmatpush1.msra.mxu0 0.0
        %1536 = vmatprep.subr.mxu0 0.0
        %1537 = vmatpush1.msra.mxu0 0.0
        %1538 = vmatprep.subr.mxu0 0.0
        %1539 = vmatpush1.msra.mxu0 0.0
        %1540 = vmatprep.subr.mxu0 0.0
        %1541 = vmatpush1.msra.mxu0 0.0
        %1542 = vmatprep.subr.mxu0 0.0
        %1543 = vmatpush1.msra.mxu0 0.0
        %1544 = vmatprep.subr.mxu0 0.0
        %1545 = vmatpush1.msra.mxu0 %v1500
        %1546 = vmatprep.subr.mxu0 0.0
        %1547 = vmatpush2.msra.mxu0 0.0
        %1548 = vmatprep.subr.mxu0 0.0
        %1549 = vmatpush2.msra.mxu0 0.0
        %1550 = vmatprep.subr.mxu0 0.0
        %1551 = vmatpush2.msra.mxu0 0.0
        %1552 = vmatprep.subr.mxu0 0.0
        %1553 = vmatpush2.msra.mxu0 0.0
        %1554 = vmatprep.subr.mxu0 0.0
        %1555 = vmatpush2.msra.mxu0 0.0
        %1556 = vmatprep.subr.mxu0 0.0
        %1557 = vmatpush2.msra.mxu0 0.0
        %1558 = vmatprep.subr.mxu0 0.0
        %1559 = vmatpush2.msra.mxu0 0.0
        %1560 = vmatprep.subr.mxu0 0.0
        %1561 = vmatpush2.msra.mxu0 0.0
        %1562 = vmatprep.subr.mxu0 0.0
        %1563 = vmatpush2.msra.mxu0 0.0
        %1564 = vmatprep.subr.mxu0 0.0
        %1565 = vmatpush2.msra.mxu0 0.0
        %1566 = vmatprep.subr.mxu0 0.0
        %1567 = vmatpush2.msra.mxu0 0.0
        %1568 = vmatprep.subr.mxu0 0.0
        %1569 = vmatpush2.msra.mxu0 0.0
        %1570 = vmatprep.subr.mxu0 0.0
        %1571 = vmatpush2.msra.mxu0 0.0
        %1572 = vmatprep.subr.mxu0 0.0
        %1573 = vmatpush2.msra.mxu0 0.0
        %1574 = vmatprep.subr.mxu0 0.0
        %1575 = vmatpush2.msra.mxu0 0.0
        %1576 = vmatprep.subr.mxu0 0.0
        %1577 = vmatpush2.msra.mxu0 0.0
        %1578 = vmatprep.mubr.f32.mxu0 0.0
        %1579 = vmatmul.mubr.f32.gmra.mxu0 %v1503
        %v1580 = vpop.f32.mrf.mxu0
        %v1581 = vadd.f32 0.0, %v1580
        %v1582 = vpop.f32.mrf.mxu0
        %1583 = vmatprep.mubr.f32.mxu0 0.0
        %1584 = vmatmul.mubr.f32.gmra.mxu0 %v1506
        %v1585 = vpop.f32.mrf.mxu0
        %v1586 = vadd.f32 0.0, %v1585
        %v1587 = vpop.f32.mrf.mxu0
        %1588 = vmatprep.mubr.f32.mxu0 0.0
        %1589 = vmatmul.mubr.f32.gmra.mxu0 %v1509
        %v1590 = vpop.f32.mrf.mxu0
        %v1591 = vadd.f32 0.0, %v1590
        %v1592 = vpop.f32.mrf.mxu0
        %1593 = vmatprep.mubr.f32.mxu0 0.0
        %1594 = vmatmul.mubr.f32.gmra.mxu0 %v1512
        %v1595 = vpop.f32.mrf.mxu0
        %v1596 = vadd.f32 0.0, %v1595
        %v1597 = vpop.f32.mrf.mxu0
        %1598 = vdwg.mxu0
        %1599 = vrot.lane.b32.xlu0 %v1098, 88
        %v1600 = vpop.permute.xlu0 %1599
        %v1603 = vsel %vm678, %v1008, 0
        %v1606 = vsel %vm678, %v1010, 0
        %v1609 = vsel %vm678, %v1012, 0
        %v1612 = vsel %vm678, %v1014, 0
        %1614 = vmatprep.subr.mxu0 0.0
        %1615 = vmatpush1.msra.mxu0 0.0
        %1616 = vmatprep.subr.mxu0 0.0
        %1617 = vmatpush1.msra.mxu0 0.0
        %1618 = vmatprep.subr.mxu0 0.0
        %1619 = vmatpush1.msra.mxu0 0.0
        %1620 = vmatprep.subr.mxu0 0.0
        %1621 = vmatpush1.msra.mxu0 0.0
        %1622 = vmatprep.subr.mxu0 0.0
        %1623 = vmatpush1.msra.mxu0 0.0
        %1624 = vmatprep.subr.mxu0 0.0
        %1625 = vmatpush1.msra.mxu0 0.0
        %1626 = vmatprep.subr.mxu0 0.0
        %1627 = vmatpush1.msra.mxu0 0.0
        %1628 = vmatprep.subr.mxu0 0.0
        %1629 = vmatpush1.msra.mxu0 0.0
        %1630 = vmatprep.subr.mxu0 0.0
        %1631 = vmatpush1.msra.mxu0 0.0
        %1632 = vmatprep.subr.mxu0 0.0
        %1633 = vmatpush1.msra.mxu0 0.0
        %1634 = vmatprep.subr.mxu0 0.0
        %1635 = vmatpush1.msra.mxu0 0.0
        %1636 = vmatprep.subr.mxu0 0.0
        %1637 = vmatpush1.msra.mxu0 0.0
        %1638 = vmatprep.subr.mxu0 0.0
        %1639 = vmatpush1.msra.mxu0 0.0
        %1640 = vmatprep.subr.mxu0 0.0
        %1641 = vmatpush1.msra.mxu0 0.0
        %1642 = vmatprep.subr.mxu0 0.0
        %1643 = vmatpush1.msra.mxu0 0.0
        %1644 = vmatprep.subr.mxu0 0.0
        %1645 = vmatpush1.msra.mxu0 %v1600
        %1646 = vmatprep.subr.mxu0 0.0
        %1647 = vmatpush2.msra.mxu0 0.0
        %1648 = vmatprep.subr.mxu0 0.0
        %1649 = vmatpush2.msra.mxu0 0.0
        %1650 = vmatprep.subr.mxu0 0.0
        %1651 = vmatpush2.msra.mxu0 0.0
        %1652 = vmatprep.subr.mxu0 0.0
        %1653 = vmatpush2.msra.mxu0 0.0
        %1654 = vmatprep.subr.mxu0 0.0
        %1655 = vmatpush2.msra.mxu0 0.0
        %1656 = vmatprep.subr.mxu0 0.0
        %1657 = vmatpush2.msra.mxu0 0.0
        %1658 = vmatprep.subr.mxu0 0.0
        %1659 = vmatpush2.msra.mxu0 0.0
        %1660 = vmatprep.subr.mxu0 0.0
        %1661 = vmatpush2.msra.mxu0 0.0
        %1662 = vmatprep.subr.mxu0 0.0
        %1663 = vmatpush2.msra.mxu0 0.0
        %1664 = vmatprep.subr.mxu0 0.0
        %1665 = vmatpush2.msra.mxu0 0.0
        %1666 = vmatprep.subr.mxu0 0.0
        %1667 = vmatpush2.msra.mxu0 0.0
        %1668 = vmatprep.subr.mxu0 0.0
        %1669 = vmatpush2.msra.mxu0 0.0
        %1670 = vmatprep.subr.mxu0 0.0
        %1671 = vmatpush2.msra.mxu0 0.0
        %1672 = vmatprep.subr.mxu0 0.0
        %1673 = vmatpush2.msra.mxu0 0.0
        %1674 = vmatprep.subr.mxu0 0.0
        %1675 = vmatpush2.msra.mxu0 0.0
        %1676 = vmatprep.subr.mxu0 0.0
        %1677 = vmatpush2.msra.mxu0 0.0
        %1678 = vmatprep.mubr.f32.mxu0 0.0
        %1679 = vmatmul.mubr.f32.gmra.mxu0 %v1603
        %v1680 = vpop.f32.mrf.mxu0
        %v1681 = vadd.f32 0.0, %v1680
        %v1682 = vpop.f32.mrf.mxu0
        %1683 = vmatprep.mubr.f32.mxu0 0.0
        %1684 = vmatmul.mubr.f32.gmra.mxu0 %v1606
        %v1685 = vpop.f32.mrf.mxu0
        %v1686 = vadd.f32 0.0, %v1685
        %v1687 = vpop.f32.mrf.mxu0
        %1688 = vmatprep.mubr.f32.mxu0 0.0
        %1689 = vmatmul.mubr.f32.gmra.mxu0 %v1609
        %v1690 = vpop.f32.mrf.mxu0
        %v1691 = vadd.f32 0.0, %v1690
        %v1692 = vpop.f32.mrf.mxu0
        %1693 = vmatprep.mubr.f32.mxu0 0.0
        %1694 = vmatmul.mubr.f32.gmra.mxu0 %v1612
        %v1695 = vpop.f32.mrf.mxu0
        %v1696 = vadd.f32 0.0, %v1695
        %v1697 = vpop.f32.mrf.mxu0
        %1698 = vdwg.mxu0
        %1699 = vrot.lane.b32.xlu0 %v1098, 80
        %v1700 = vpop.permute.xlu0 %1699
        %v1703 = vsel %vm678, %v1016, 0
        %v1706 = vsel %vm678, %v1018, 0
        %v1709 = vsel %vm678, %v1020, 0
        %v1712 = vsel %vm678, %v1022, 0
        %1714 = vmatprep.subr.mxu0 0.0
        %1715 = vmatpush1.msra.mxu0 0.0
        %1716 = vmatprep.subr.mxu0 0.0
        %1717 = vmatpush1.msra.mxu0 0.0
        %1718 = vmatprep.subr.mxu0 0.0
        %1719 = vmatpush1.msra.mxu0 0.0
        %1720 = vmatprep.subr.mxu0 0.0
        %1721 = vmatpush1.msra.mxu0 0.0
        %1722 = vmatprep.subr.mxu0 0.0
        %1723 = vmatpush1.msra.mxu0 0.0
        %1724 = vmatprep.subr.mxu0 0.0
        %1725 = vmatpush1.msra.mxu0 0.0
        %1726 = vmatprep.subr.mxu0 0.0
        %1727 = vmatpush1.msra.mxu0 0.0
        %1728 = vmatprep.subr.mxu0 0.0
        %1729 = vmatpush1.msra.mxu0 0.0
        %1730 = vmatprep.subr.mxu0 0.0
        %1731 = vmatpush1.msra.mxu0 0.0
        %1732 = vmatprep.subr.mxu0 0.0
        %1733 = vmatpush1.msra.mxu0 0.0
        %1734 = vmatprep.subr.mxu0 0.0
        %1735 = vmatpush1.msra.mxu0 0.0
        %1736 = vmatprep.subr.mxu0 0.0
        %1737 = vmatpush1.msra.mxu0 0.0
        %1738 = vmatprep.subr.mxu0 0.0
        %1739 = vmatpush1.msra.mxu0 0.0
        %1740 = vmatprep.subr.mxu0 0.0
        %1741 = vmatpush1.msra.mxu0 0.0
        %1742 = vmatprep.subr.mxu0 0.0
        %1743 = vmatpush1.msra.mxu0 0.0
        %1744 = vmatprep.subr.mxu0 0.0
        %1745 = vmatpush1.msra.mxu0 %v1700
        %1746 = vmatprep.subr.mxu0 0.0
        %1747 = vmatpush2.msra.mxu0 0.0
        %1748 = vmatprep.subr.mxu0 0.0
        %1749 = vmatpush2.msra.mxu0 0.0
        %1750 = vmatprep.subr.mxu0 0.0
        %1751 = vmatpush2.msra.mxu0 0.0
        %1752 = vmatprep.subr.mxu0 0.0
        %1753 = vmatpush2.msra.mxu0 0.0
        %1754 = vmatprep.subr.mxu0 0.0
        %1755 = vmatpush2.msra.mxu0 0.0
        %1756 = vmatprep.subr.mxu0 0.0
        %1757 = vmatpush2.msra.mxu0 0.0
        %1758 = vmatprep.subr.mxu0 0.0
        %1759 = vmatpush2.msra.mxu0 0.0
        %1760 = vmatprep.subr.mxu0 0.0
        %1761 = vmatpush2.msra.mxu0 0.0
        %1762 = vmatprep.subr.mxu0 0.0
        %1763 = vmatpush2.msra.mxu0 0.0
        %1764 = vmatprep.subr.mxu0 0.0
        %1765 = vmatpush2.msra.mxu0 0.0
        %1766 = vmatprep.subr.mxu0 0.0
        %1767 = vmatpush2.msra.mxu0 0.0
        %1768 = vmatprep.subr.mxu0 0.0
        %1769 = vmatpush2.msra.mxu0 0.0
        %1770 = vmatprep.subr.mxu0 0.0
        %1771 = vmatpush2.msra.mxu0 0.0
        %1772 = vmatprep.subr.mxu0 0.0
        %1773 = vmatpush2.msra.mxu0 0.0
        %1774 = vmatprep.subr.mxu0 0.0
        %1775 = vmatpush2.msra.mxu0 0.0
        %1776 = vmatprep.subr.mxu0 0.0
        %1777 = vmatpush2.msra.mxu0 0.0
        %1778 = vmatprep.mubr.f32.mxu0 0.0
        %1779 = vmatmul.mubr.f32.gmra.mxu0 %v1703
        %v1780 = vpop.f32.mrf.mxu0
        %v1781 = vadd.f32 0.0, %v1780
        %v1782 = vpop.f32.mrf.mxu0
        %1783 = vmatprep.mubr.f32.mxu0 0.0
        %1784 = vmatmul.mubr.f32.gmra.mxu0 %v1706
        %v1785 = vpop.f32.mrf.mxu0
        %v1786 = vadd.f32 0.0, %v1785
        %v1787 = vpop.f32.mrf.mxu0
        %1788 = vmatprep.mubr.f32.mxu0 0.0
        %1789 = vmatmul.mubr.f32.gmra.mxu0 %v1709
        %v1790 = vpop.f32.mrf.mxu0
        %v1791 = vadd.f32 0.0, %v1790
        %v1792 = vpop.f32.mrf.mxu0
        %1793 = vmatprep.mubr.f32.mxu0 0.0
        %1794 = vmatmul.mubr.f32.gmra.mxu0 %v1712
        %v1795 = vpop.f32.mrf.mxu0
        %v1796 = vadd.f32 0.0, %v1795
        %v1797 = vpop.f32.mrf.mxu0
        %1798 = vdwg.mxu0
        %1799 = vrot.lane.b32.xlu0 %v1098, 72
        %v1800 = vpop.permute.xlu0 %1799
        %v1803 = vsel %vm678, %v1024, 0
        %v1806 = vsel %vm678, %v1026, 0
        %v1809 = vsel %vm678, %v1028, 0
        %v1812 = vsel %vm678, %v1030, 0
        %1814 = vmatprep.subr.mxu0 0.0
        %1815 = vmatpush1.msra.mxu0 0.0
        %1816 = vmatprep.subr.mxu0 0.0
        %1817 = vmatpush1.msra.mxu0 0.0
        %1818 = vmatprep.subr.mxu0 0.0
        %1819 = vmatpush1.msra.mxu0 0.0
        %1820 = vmatprep.subr.mxu0 0.0
        %1821 = vmatpush1.msra.mxu0 0.0
        %1822 = vmatprep.subr.mxu0 0.0
        %1823 = vmatpush1.msra.mxu0 0.0
        %1824 = vmatprep.subr.mxu0 0.0
        %1825 = vmatpush1.msra.mxu0 0.0
        %1826 = vmatprep.subr.mxu0 0.0
        %1827 = vmatpush1.msra.mxu0 0.0
        %1828 = vmatprep.subr.mxu0 0.0
        %1829 = vmatpush1.msra.mxu0 0.0
        %1830 = vmatprep.subr.mxu0 0.0
        %1831 = vmatpush1.msra.mxu0 0.0
        %1832 = vmatprep.subr.mxu0 0.0
        %1833 = vmatpush1.msra.mxu0 0.0
        %1834 = vmatprep.subr.mxu0 0.0
        %1835 = vmatpush1.msra.mxu0 0.0
        %1836 = vmatprep.subr.mxu0 0.0
        %1837 = vmatpush1.msra.mxu0 0.0
        %1838 = vmatprep.subr.mxu0 0.0
        %1839 = vmatpush1.msra.mxu0 0.0
        %1840 = vmatprep.subr.mxu0 0.0
        %1841 = vmatpush1.msra.mxu0 0.0
        %1842 = vmatprep.subr.mxu0 0.0
        %1843 = vmatpush1.msra.mxu0 0.0
        %1844 = vmatprep.subr.mxu0 0.0
        %1845 = vmatpush1.msra.mxu0 %v1800
        %1846 = vmatprep.subr.mxu0 0.0
        %1847 = vmatpush2.msra.mxu0 0.0
        %1848 = vmatprep.subr.mxu0 0.0
        %1849 = vmatpush2.msra.mxu0 0.0
        %1850 = vmatprep.subr.mxu0 0.0
        %1851 = vmatpush2.msra.mxu0 0.0
        %1852 = vmatprep.subr.mxu0 0.0
        %1853 = vmatpush2.msra.mxu0 0.0
        %1854 = vmatprep.subr.mxu0 0.0
        %1855 = vmatpush2.msra.mxu0 0.0
        %1856 = vmatprep.subr.mxu0 0.0
        %1857 = vmatpush2.msra.mxu0 0.0
        %1858 = vmatprep.subr.mxu0 0.0
        %1859 = vmatpush2.msra.mxu0 0.0
        %1860 = vmatprep.subr.mxu0 0.0
        %1861 = vmatpush2.msra.mxu0 0.0
        %1862 = vmatprep.subr.mxu0 0.0
        %1863 = vmatpush2.msra.mxu0 0.0
        %1864 = vmatprep.subr.mxu0 0.0
        %1865 = vmatpush2.msra.mxu0 0.0
        %1866 = vmatprep.subr.mxu0 0.0
        %1867 = vmatpush2.msra.mxu0 0.0
        %1868 = vmatprep.subr.mxu0 0.0
        %1869 = vmatpush2.msra.mxu0 0.0
        %1870 = vmatprep.subr.mxu0 0.0
        %1871 = vmatpush2.msra.mxu0 0.0
        %1872 = vmatprep.subr.mxu0 0.0
        %1873 = vmatpush2.msra.mxu0 0.0
        %1874 = vmatprep.subr.mxu0 0.0
        %1875 = vmatpush2.msra.mxu0 0.0
        %1876 = vmatprep.subr.mxu0 0.0
        %1877 = vmatpush2.msra.mxu0 0.0
        %1878 = vmatprep.mubr.f32.mxu0 0.0
        %1879 = vmatmul.mubr.f32.gmra.mxu0 %v1803
        %v1880 = vpop.f32.mrf.mxu0
        %v1881 = vadd.f32 0.0, %v1880
        %v1882 = vpop.f32.mrf.mxu0
        %1883 = vmatprep.mubr.f32.mxu0 0.0
        %1884 = vmatmul.mubr.f32.gmra.mxu0 %v1806
        %v1885 = vpop.f32.mrf.mxu0
        %v1886 = vadd.f32 0.0, %v1885
        %v1887 = vpop.f32.mrf.mxu0
        %1888 = vmatprep.mubr.f32.mxu0 0.0
        %1889 = vmatmul.mubr.f32.gmra.mxu0 %v1809
        %v1890 = vpop.f32.mrf.mxu0
        %v1891 = vadd.f32 0.0, %v1890
        %v1892 = vpop.f32.mrf.mxu0
        %1893 = vmatprep.mubr.f32.mxu0 0.0
        %1894 = vmatmul.mubr.f32.gmra.mxu0 %v1812
        %v1895 = vpop.f32.mrf.mxu0
        %v1896 = vadd.f32 0.0, %v1895
        %v1897 = vpop.f32.mrf.mxu0
        %1898 = vdwg.mxu0
        %1903 = vrot.lane.b32.xlu0 %v1281, 8
        %v1904 = vpop.permute.xlu0 %1903
        %1905 = vrot.lane.b32.xlu0 %v1286, 8
        %v1906 = vpop.permute.xlu0 %1905
        %1907 = vrot.lane.b32.xlu0 %v1291, 8
        %v1908 = vpop.permute.xlu0 %1907
        %1909 = vrot.lane.b32.xlu0 %v1296, 8
        %v1910 = vpop.permute.xlu0 %1909
        %1919 = vrot.lane.b32.xlu0 %v1381, 16
        %v1920 = vpop.permute.xlu0 %1919
        %1921 = vrot.lane.b32.xlu0 %v1386, 16
        %v1922 = vpop.permute.xlu0 %1921
        %1923 = vrot.lane.b32.xlu0 %v1391, 16
        %v1924 = vpop.permute.xlu0 %1923
        %1925 = vrot.lane.b32.xlu0 %v1396, 16
        %v1926 = vpop.permute.xlu0 %1925
        %1935 = vrot.lane.b32.xlu0 %v1481, 24
        %v1936 = vpop.permute.xlu0 %1935
        %1937 = vrot.lane.b32.xlu0 %v1486, 24
        %v1938 = vpop.permute.xlu0 %1937
        %1939 = vrot.lane.b32.xlu0 %v1491, 24
        %v1940 = vpop.permute.xlu0 %1939
        %1941 = vrot.lane.b32.xlu0 %v1496, 24
        %v1942 = vpop.permute.xlu0 %1941
        %1951 = vrot.lane.b32.xlu0 %v1581, 32
        %v1952 = vpop.permute.xlu0 %1951
        %1953 = vrot.lane.b32.xlu0 %v1586, 32
        %v1954 = vpop.permute.xlu0 %1953
        %1955 = vrot.lane.b32.xlu0 %v1591, 32
        %v1956 = vpop.permute.xlu0 %1955
        %1957 = vrot.lane.b32.xlu0 %v1596, 32
        %v1958 = vpop.permute.xlu0 %1957
        %1967 = vrot.lane.b32.xlu0 %v1681, 40
        %v1968 = vpop.permute.xlu0 %1967
        %1969 = vrot.lane.b32.xlu0 %v1686, 40
        %v1970 = vpop.permute.xlu0 %1969
        %1971 = vrot.lane.b32.xlu0 %v1691, 40
        %v1972 = vpop.permute.xlu0 %1971
        %1973 = vrot.lane.b32.xlu0 %v1696, 40
        %v1974 = vpop.permute.xlu0 %1973
        %1983 = vrot.lane.b32.xlu0 %v1781, 48
        %v1984 = vpop.permute.xlu0 %1983
        %1985 = vrot.lane.b32.xlu0 %v1786, 48
        %v1986 = vpop.permute.xlu0 %1985
        %1987 = vrot.lane.b32.xlu0 %v1791, 48
        %v1988 = vpop.permute.xlu0 %1987
        %1989 = vrot.lane.b32.xlu0 %v1796, 48
        %v1990 = vpop.permute.xlu0 %1989
        %1999 = vrot.lane.b32.xlu0 %v1881, 56
        %v2000 = vpop.permute.xlu0 %1999
        %2001 = vrot.lane.b32.xlu0 %v1886, 56
        %v2002 = vpop.permute.xlu0 %2001
        %2003 = vrot.lane.b32.xlu0 %v1891, 56
        %v2004 = vpop.permute.xlu0 %2003
        %2005 = vrot.lane.b32.xlu0 %v1896, 56
        %v2006 = vpop.permute.xlu0 %2005
        %v2011 = vsel %vm678, %v1180, %v1904
        %v2012 = vsel %vm678, %v1185, %v1906
        %v2013 = vsel %vm678, %v1190, %v1908
        %v2014 = vsel %vm678, %v1195, %v1910
        %vm2015 = vcmask 130048
        %v2016 = vsel %vm2015, %v2011, %v1920
        %v2017 = vsel %vm2015, %v2012, %v1922
        %v2018 = vsel %vm2015, %v2013, %v1924
        %v2019 = vsel %vm2015, %v2014, %v1926
        %vm2020 = vcmask 195584
        %v2021 = vsel %vm2020, %v2016, %v1936
        %v2022 = vsel %vm2020, %v2017, %v1938
        %v2023 = vsel %vm2020, %v2018, %v1940
        %v2024 = vsel %vm2020, %v2019, %v1942
        %v2025 = vsel %vm325, %v2021, %v1952
        %v2026 = vsel %vm325, %v2022, %v1954
        %v2027 = vsel %vm325, %v2023, %v1956
        %v2028 = vsel %vm325, %v2024, %v1958
        %vm2029 = vcmask 326656
        %v2030 = vsel %vm2029, %v2025, %v1968
        %v2031 = vsel %vm2029, %v2026, %v1970
        %v2032 = vsel %vm2029, %v2027, %v1972
        %v2033 = vsel %vm2029, %v2028, %v1974
        %vm2034 = vcmask 392192
        %v2035 = vsel %vm2034, %v2030, %v1984
        %v2036 = vsel %vm2034, %v2031, %v1986
        %v2037 = vsel %vm2034, %v2032, %v1988
        %v2038 = vsel %vm2034, %v2033, %v1990
        %vm2039 = vcmask 457728
        %v2040 = vsel %vm2039, %v2035, %v2000
        %v2041 = vsel %vm2039, %v2036, %v2002
        %v2042 = vsel %vm2039, %v2037, %v2004
        %v2043 = vsel %vm2039, %v2038, %v2006
        %vm2044 = vcmask 523264
        %v2046 = vsel %vm2044, %v2040, 0
        %v2049 = vsel %vm2044, %v2041, 0
        %v2052 = vsel %vm2044, %v2042, 0
        %v2055 = vsel %vm2044, %v2043, 0
        %2057 = vmatprep.subr.mxu0 0.0
        %2058 = vmatpush1.msra.mxu0 0.0
        %2059 = vmatprep.subr.mxu0 0.0
        %2060 = vmatpush1.msra.mxu0 0.0
        %2061 = vmatprep.subr.mxu0 0.0
        %2062 = vmatpush1.msra.mxu0 0.0
        %2063 = vmatprep.subr.mxu0 0.0
        %2064 = vmatpush1.msra.mxu0 0.0
        %2065 = vmatprep.subr.mxu0 0.0
        %2066 = vmatpush1.msra.mxu0 0.0
        %2067 = vmatprep.subr.mxu0 0.0
        %2068 = vmatpush1.msra.mxu0 0.0
        %2069 = vmatprep.subr.mxu0 0.0
        %2070 = vmatpush1.msra.mxu0 0.0
        %2071 = vmatprep.subr.mxu0 0.0
        %2072 = vmatpush1.msra.mxu0 0.0
        %2073 = vmatprep.subr.mxu0 0.0
        %2074 = vmatpush1.msra.mxu0 %v323
        %2075 = vmatprep.subr.mxu0 0.0
        %2076 = vmatpush1.msra.mxu0 %v322
        %2077 = vmatprep.subr.mxu0 0.0
        %2078 = vmatpush1.msra.mxu0 %v321
        %2079 = vmatprep.subr.mxu0 0.0
        %2080 = vmatpush1.msra.mxu0 %v320
        %2081 = vmatprep.subr.mxu0 0.0
        %2082 = vmatpush1.msra.mxu0 %v319
        %2083 = vmatprep.subr.mxu0 0.0
        %2084 = vmatpush1.msra.mxu0 %v318
        %2085 = vmatprep.subr.mxu0 0.0
        %2086 = vmatpush1.msra.mxu0 %v317
        %2087 = vmatprep.subr.mxu0 0.0
        %2088 = vmatpush1.msra.mxu0 %v316
        %2089 = vmatprep.subr.mxu0 0.0
        %2090 = vmatpush2.msra.mxu0 0.0
        %2091 = vmatprep.subr.mxu0 0.0
        %2092 = vmatpush2.msra.mxu0 0.0
        %2093 = vmatprep.subr.mxu0 0.0
        %2094 = vmatpush2.msra.mxu0 0.0
        %2095 = vmatprep.subr.mxu0 0.0
        %2096 = vmatpush2.msra.mxu0 0.0
        %2097 = vmatprep.subr.mxu0 0.0
        %2098 = vmatpush2.msra.mxu0 0.0
        %2099 = vmatprep.subr.mxu0 0.0
        %2100 = vmatpush2.msra.mxu0 0.0
        %2101 = vmatprep.subr.mxu0 0.0
        %2102 = vmatpush2.msra.mxu0 0.0
        %2103 = vmatprep.subr.mxu0 0.0
        %2104 = vmatpush2.msra.mxu0 0.0
        %2105 = vmatprep.subr.mxu0 0.0
        %2106 = vmatpush2.msra.mxu0 0.0
        %2107 = vmatprep.subr.mxu0 0.0
        %2108 = vmatpush2.msra.mxu0 0.0
        %2109 = vmatprep.subr.mxu0 0.0
        %2110 = vmatpush2.msra.mxu0 0.0
        %2111 = vmatprep.subr.mxu0 0.0
        %2112 = vmatpush2.msra.mxu0 0.0
        %2113 = vmatprep.subr.mxu0 0.0
        %2114 = vmatpush2.msra.mxu0 0.0
        %2115 = vmatprep.subr.mxu0 0.0
        %2116 = vmatpush2.msra.mxu0 0.0
        %2117 = vmatprep.subr.mxu0 0.0
        %2118 = vmatpush2.msra.mxu0 0.0
        %2119 = vmatprep.subr.mxu0 0.0
        %2120 = vmatpush2.msra.mxu0 0.0
        %2121 = vmatprep.mubr.f32.mxu0 0.0
        %2122 = vmatmul.mubr.f32.gmra.mxu0 %v2046
        %v2123 = vpop.f32.mrf.mxu0
        %v2124 = vadd.f32 0.0, %v2123
        %v2125 = vpop.f32.mrf.mxu0
        %2126 = vmatprep.mubr.f32.mxu0 0.0
        %2127 = vmatmul.mubr.f32.gmra.mxu0 %v2049
        %v2128 = vpop.f32.mrf.mxu0
        %v2129 = vadd.f32 0.0, %v2128
        %v2130 = vpop.f32.mrf.mxu0
        %2131 = vmatprep.mubr.f32.mxu0 0.0
        %2132 = vmatmul.mubr.f32.gmra.mxu0 %v2052
        %v2133 = vpop.f32.mrf.mxu0
        %v2134 = vadd.f32 0.0, %v2133
        %v2135 = vpop.f32.mrf.mxu0
        %2136 = vmatprep.mubr.f32.mxu0 0.0
        %2137 = vmatmul.mubr.f32.gmra.mxu0 %v2055
        %v2138 = vpop.f32.mrf.mxu0
        %v2139 = vadd.f32 0.0, %v2138
        %v2140 = vpop.f32.mrf.mxu0
        %2141 = vdwg.mxu0
        %v2142 = vadd.f32 %v274, %v2124
        %v2143 = vadd.f32 %v275, %v2129
        %v2144 = vadd.f32 %v276, %v2134
        %v2145 = vadd.f32 %v277, %v2139
        %v2147 = vsel %vm325, %v324, 0
        %v2150 = vsel %vm325, %v2142, 0
        %v2153 = vsel %vm325, %v2143, 0
        %2155 = vmatprep.subr.mxu0 0.0
        %2156 = vmatpush1.xpose.msra.mxu0 0.0
        %2157 = vmatprep.subr.mxu0 0.0
        %2158 = vmatpush1.xpose.msra.mxu0 0.0
        %2159 = vmatprep.subr.mxu0 0.0
        %2160 = vmatpush1.xpose.msra.mxu0 0.0
        %2161 = vmatprep.subr.mxu0 0.0
        %2162 = vmatpush1.xpose.msra.mxu0 0.0
        %2163 = vmatprep.subr.mxu0 0.0
        %2164 = vmatpush1.xpose.msra.mxu0 0.0
        %2165 = vmatprep.subr.mxu0 0.0
        %2166 = vmatpush1.xpose.msra.mxu0 0.0
        %2167 = vmatprep.subr.mxu0 0.0
        %2168 = vmatpush1.xpose.msra.mxu0 0.0
        %2169 = vmatprep.subr.mxu0 0.0
        %2170 = vmatpush1.xpose.msra.mxu0 0.0
        %2171 = vmatprep.subr.mxu0 0.0
        %2172 = vmatpush1.xpose.msra.mxu0 0.0
        %2173 = vmatprep.subr.mxu0 0.0
        %2174 = vmatpush1.xpose.msra.mxu0 0.0
        %2175 = vmatprep.subr.mxu0 0.0
        %2176 = vmatpush1.xpose.msra.mxu0 0.0
        %2177 = vmatprep.subr.mxu0 0.0
        %2178 = vmatpush1.xpose.msra.mxu0 0.0
        %2179 = vmatprep.subr.mxu0 0.0
        %2180 = vmatpush1.xpose.msra.mxu0 0.0
        %2181 = vmatprep.subr.mxu0 0.0
        %2182 = vmatpush1.xpose.msra.mxu0 0.0
        %2183 = vmatprep.subr.mxu0 0.0
        %2184 = vmatpush1.xpose.msra.mxu0 %v2153
        %2185 = vmatprep.subr.mxu0 0.0
        %2186 = vmatpush1.xpose.msra.mxu0 %v2150
        %2187 = vmatprep.subr.mxu0 0.0
        %2188 = vmatpush2.xpose.msra.mxu0 0.0
        %2189 = vmatprep.subr.mxu0 0.0
        %2190 = vmatpush2.xpose.msra.mxu0 0.0
        %2191 = vmatprep.subr.mxu0 0.0
        %2192 = vmatpush2.xpose.msra.mxu0 0.0
        %2193 = vmatprep.subr.mxu0 0.0
        %2194 = vmatpush2.xpose.msra.mxu0 0.0
        %2195 = vmatprep.subr.mxu0 0.0
        %2196 = vmatpush2.xpose.msra.mxu0 0.0
        %2197 = vmatprep.subr.mxu0 0.0
        %2198 = vmatpush2.xpose.msra.mxu0 0.0
        %2199 = vmatprep.subr.mxu0 0.0
        %2200 = vmatpush2.xpose.msra.mxu0 0.0
        %2201 = vmatprep.subr.mxu0 0.0
        %2202 = vmatpush2.xpose.msra.mxu0 0.0
        %2203 = vmatprep.subr.mxu0 0.0
        %2204 = vmatpush2.xpose.msra.mxu0 0.0
        %2205 = vmatprep.subr.mxu0 0.0
        %2206 = vmatpush2.xpose.msra.mxu0 0.0
        %2207 = vmatprep.subr.mxu0 0.0
        %2208 = vmatpush2.xpose.msra.mxu0 0.0
        %2209 = vmatprep.subr.mxu0 0.0
        %2210 = vmatpush2.xpose.msra.mxu0 0.0
        %2211 = vmatprep.subr.mxu0 0.0
        %2212 = vmatpush2.xpose.msra.mxu0 0.0
        %2213 = vmatprep.subr.mxu0 0.0
        %2214 = vmatpush2.xpose.msra.mxu0 0.0
        %2215 = vmatprep.subr.mxu0 0.0
        %2216 = vmatpush2.xpose.msra.mxu0 0.0
        %2217 = vmatprep.subr.mxu0 0.0
        %2218 = vmatpush2.xpose.msra.mxu0 0.0
        %2219 = vmatprep.mubr.f32.mxu0 0.0
        %2220 = vmatmul.mubr.f32.gmra.mxu0 %v2147
        %v2221 = vpop.f32.mrf.mxu0
        %v2222 = vadd.f32 0.0, %v2221
        %v2223 = vpop.f32.mrf.mxu0
        %2224 = vdwg.mxu0
        %v2225 = vmul.f32 %v2222, 0.5
        %v2226 = vmul.f32 %v2222, 0.70710677
        %v2227 = verf.f32.pop %v2226
        %v2228 = vadd.f32 %v2227, 1.0
        %v2229 = vmul.f32 %v2225, %v2228
        %v2231 = vsel %vm2015, %v2229, 0
        %2233 = vmatprep.subr.mxu0 0.0
        %2234 = vmatpush1.msra.mxu0 0.0
        %2235 = vmatprep.subr.mxu0 0.0
        %2236 = vmatpush1.msra.mxu0 0.0
        %2237 = vmatprep.subr.mxu0 0.0
        %2238 = vmatpush1.msra.mxu0 0.0
        %2239 = vmatprep.subr.mxu0 0.0
        %2240 = vmatpush1.msra.mxu0 0.0
        %2241 = vmatprep.subr.mxu0 0.0
        %2242 = vmatpush1.msra.mxu0 0.0
        %2243 = vmatprep.subr.mxu0 0.0
        %2244 = vmatpush1.msra.mxu0 0.0
        %2245 = vmatprep.subr.mxu0 0.0
        %2246 = vmatpush1.msra.mxu0 0.0
        %2247 = vmatprep.subr.mxu0 0.0
        %2248 = vmatpush1.msra.mxu0 0.0
        %2249 = vmatprep.subr.mxu0 0.0
        %2250 = vmatpush1.msra.mxu0 0.0
        %2251 = vmatprep.subr.mxu0 0.0
        %2252 = vmatpush1.msra.mxu0 0.0
        %2253 = vmatprep.subr.mxu0 0.0
        %2254 = vmatpush1.msra.mxu0 0.0
        %2255 = vmatprep.subr.mxu0 0.0
        %2256 = vmatpush1.msra.mxu0 0.0
        %2257 = vmatprep.subr.mxu0 0.0
        %2258 = vmatpush1.msra.mxu0 0.0
        %2259 = vmatprep.subr.mxu0 0.0
        %2260 = vmatpush1.msra.mxu0 0.0
        %2261 = vmatprep.subr.mxu0 0.0
        %2262 = vmatpush1.msra.mxu0 %v2145
        %2263 = vmatprep.subr.mxu0 0.0
        %2264 = vmatpush1.msra.mxu0 %v2144
        %2265 = vmatprep.subr.mxu0 0.0
        %2266 = vmatpush2.msra.mxu0 0.0
        %2267 = vmatprep.subr.mxu0 0.0
        %2268 = vmatpush2.msra.mxu0 0.0
        %2269 = vmatprep.subr.mxu0 0.0
        %2270 = vmatpush2.msra.mxu0 0.0
        %2271 = vmatprep.subr.mxu0 0.0
        %2272 = vmatpush2.msra.mxu0 0.0
        %2273 = vmatprep.subr.mxu0 0.0
        %2274 = vmatpush2.msra.mxu0 0.0
        %2275 = vmatprep.subr.mxu0 0.0
        %2276 = vmatpush2.msra.mxu0 0.0
        %2277 = vmatprep.subr.mxu0 0.0
        %2278 = vmatpush2.msra.mxu0 0.0
        %2279 = vmatprep.subr.mxu0 0.0
        %2280 = vmatpush2.msra.mxu0 0.0
        %2281 = vmatprep.subr.mxu0 0.0
        %2282 = vmatpush2.msra.mxu0 0.0
        %2283 = vmatprep.subr.mxu0 0.0
        %2284 = vmatpush2.msra.mxu0 0.0
        %2285 = vmatprep.subr.mxu0 0.0
        %2286 = vmatpush2.msra.mxu0 0.0
        %2287 = vmatprep.subr.mxu0 0.0
        %2288 = vmatpush2.msra.mxu0 0.0
        %2289 = vmatprep.subr.mxu0 0.0
        %2290 = vmatpush2.msra.mxu0 0.0
        %2291 = vmatprep.subr.mxu0 0.0
        %2292 = vmatpush2.msra.mxu0 0.0
        %2293 = vmatprep.subr.mxu0 0.0
        %2294 = vmatpush2.msra.mxu0 0.0
        %2295 = vmatprep.subr.mxu0 0.0
        %2296 = vmatpush2.msra.mxu0 0.0
        %2297 = vmatprep.mubr.f32.mxu0 0.0
        %2298 = vmatmul.mubr.f32.gmra.mxu0 %v2231
        %v2299 = vpop.f32.mrf.mxu0
        %v2300 = vadd.f32 0.0, %v2299
        %v2301 = vpop.f32.mrf.mxu0
        %2302 = vdwg.mxu0
        %2303 = vst.msk [vmem:[%s269] sm:$0xff] %vm325, %v2300
        %s2304 = sand.u32 %s181, 1
        %s2305 = scalar_lea.sflag [#allocation3], %s2304
        %s2306 = sand.u32 %s181, 1
        %s2307 = smul.addr %s2306, 8
        %s2308 = scalar_lea.vmem [#allocation2], %s2307
        // Predicated region
        $region49: #{tpu_custom_call.1} parent=47 // pred_check
          %p2309 = pneg %p191
        $region50: #{tpu_custom_call.1} parent=47 // pred_check_branch
          %2311 = sbr.rel (%p2309) target = $region52
        $region51: #{tpu_custom_call.1} parent=47 // pred_region
          %s2313 = ssub.s32 128, 128
          %2314 = vsyncadd %s2305, %s2313
          %s2315 = smul.addr %s21, 128
          %s2316 = scalar_lea.hbm %s7, %s2315
          %s2318 = sshll.u32 %s2308, 4
          %s2319 = int_to_ptr.vmem [resolvable:$true] %s2318
          %2321 = dma.vmem_to_hbm [thread:$0]  %s2319, 128, %s2316, %s2305
        $region52: #{tpu_custom_call.1} parent=47 // pred_fallthru
          _
      $region48: #{tpu_custom_call.1} parent=5 // pred_fallthru
        _
      %p2322 = scmp.le.s32.totalorder 2, %s16
      // Predicated region
      $region53: #{tpu_custom_call.1} parent=5 // pred_check
        %p2323 = pneg %p2322
      $region54: #{tpu_custom_call.1} parent=5 // pred_check_branch
        %2325 = sbr.rel (%p2323) target = $region56
      $region55: #{tpu_custom_call.1} parent=5 // pred_region
        %s2326 = ssub.s32 %s16, 2
        // Predicated region
        $region57: #{tpu_custom_call.1} parent=55 // pred_check
          %p2327 = pneg %p197
        $region58: #{tpu_custom_call.1} parent=55 // pred_check_branch
          %2329 = sbr.rel (%p2327) target = $region60
        $region59: #{tpu_custom_call.1} parent=55 // pred_region
          %s2330 = sand.u32 %s182, 1
          %s2331 = scalar_lea.sflag [#allocation3], %s2330
          %s2332 = sand.u32 %s182, 1
          %s2333 = smul.addr %s2332, 8
          %s2334 = scalar_lea.vmem [#allocation2], %s2333
          %2335 = dma.done %s2331, 128
        $region60: #{tpu_custom_call.1} parent=55 // pred_fallthru
          _
      $region56: #{tpu_custom_call.1} parent=5 // pred_fallthru
        _
    $region6: #{tpu_custom_call.1} parent=1 // loop_footer
      %s20 = sadd.s32 1, %s16
    $region7: #{tpu_custom_call.1} parent=1 // loop_footer_branch
      %15 = sbr.rel target = $region3
    $region8: #{tpu_custom_call.1} parent=1 // loop_exit
      _
    %2336 = vsyncpa [#allocation3], 1
    %s2337 = scalar_lea.sflag [#allocation3], 1
    %2338 = vsyncpa %s2337, 1

</llo_original>
